<compile_context>
chip_gen: v5e
topology: v5e:2x2
jax: 0.10.0
libtpu: 0.0.40
codegen_flags: <defaults>
</compile_context>

<pallas_src>
import functools

import jax
import jax.numpy as jnp
from jax import lax
from jax.experimental import pallas as pl
from jax.experimental.pallas import tpu as pltpu

LANE = 128     # lane width
SUB = 8        # f32 sublane tile (one pixel-vreg = (8, 128) pixels)
LCHUNK = 32    # label-chunk rows (int8 native sublane tile)


def _round_up(x, m):
    return ((x + m - 1) // m) * m


def _cdiv(a, b):
    return -(-a // b)


def _dc_focal_kernel(logits_ref, labels_ref,
                     tp_ref, sp_ref, cnt_ref, fl_ref,
                     *, gamma, a_coef, b_coef, has_pad, approx_recip):
    t = pl.program_id(2)
    C = logits_ref.shape[1]
    S = logits_ref.shape[2]

    # Resident output accumulators: zero once per (batch, spatial-chunk).
    @pl.when(t == 0)
    def _():
        tp_ref[...] = jnp.zeros_like(tp_ref)
        sp_ref[...] = jnp.zeros_like(sp_ref)
        cnt_ref[...] = jnp.zeros_like(cnt_ref)
        fl_ref[...] = jnp.zeros_like(fl_ref)

    zero = jnp.zeros((SUB, LANE), jnp.float32)
    carry0 = ((zero,) * C, (zero,) * C, (zero,) * C, zero)

    def process_chunk(off, lab, carry):
        """One (8,128)-pixel chunk: softmax over C + per-class stats + focal."""
        tp_c, sp_c, cnt_c, fl_c = carry

        xs = [logits_ref[0, c, pl.ds(off, SUB), :].astype(jnp.float32)
              for c in range(C)]
        m = xs[0]
        for c in range(1, C):
            m = jnp.maximum(m, xs[c])
        es = [jnp.exp(x - m) for x in xs]
        tot = es[0]
        for c in range(1, C):
            tot = tot + es[c]
        inv = pl.reciprocal(tot, approx=approx_recip)

        if has_pad:
            # Padded pixels carry label -1: zero out their softmax probs so
            # tp / sum_p / p_label all exclude them exactly.
            valid = (lab >= 0.0).astype(jnp.float32)
            inv = inv * valid

        p_label = None
        new_tp, new_sp, new_cnt = [], [], []
        for c in range(C):
            pc = es[c] * inv                       # softmax prob of class c
            yc = (lab == float(c)).astype(jnp.float32)
            pyc = pc * yc
            new_tp.append(tp_c[c] + pyc)           # -> tp_c
            new_sp.append(sp_c[c] + pc)            # -> sum_p_c (fp = sum_p - tp)
            new_cnt.append(cnt_c[c] + yc)          # -> count_c (fn = count - tp)
            p_label = pyc if p_label is None else p_label + pyc

        # focal per-pixel term, pt = a*p_label + b (affine one-hot identity)
        pt = a_coef * p_label + b_coef
        omp = 1.0 - pt
        fw = omp * omp if gamma == 2.0 else jnp.power(omp, gamma)
        fl_term = -fw * jnp.log(pt)
        if has_pad:
            fl_term = fl_term * valid
        return (tuple(new_tp), tuple(new_sp), tuple(new_cnt), fl_c + fl_term)

    def body(i, carry):
        base = pl.multiple_of(i * LCHUNK, LCHUNK)
        # One tile-aligned (32,128) label load per iteration, widened once.
        lab32 = labels_ref[0, pl.ds(base, LCHUNK), :].astype(jnp.float32)
        for u in range(LCHUNK // SUB):            # manual 4x unroll
            off = pl.multiple_of(base + u * SUB, SUB)
            carry = process_chunk(off, lab32[u * SUB:(u + 1) * SUB], carry)
        return carry

    tp_f, sp_f, cnt_f, fl_f = lax.fori_loop(0, S // LCHUNK, body, carry0)

    # One (8,128) RMW per class per statistic per grid step.
    for c in range(C):
        tp_ref[0, 0, c * SUB:(c + 1) * SUB, :] += tp_f[c]
        sp_ref[0, 0, c * SUB:(c + 1) * SUB, :] += sp_f[c]
        cnt_ref[0, 0, c * SUB:(c + 1) * SUB, :] += cnt_f[c]
    fl_ref[0, 0, :, :] += fl_f


def dc_and_focal_loss(net_output, target, weight=None, *,
                      smooth=1.0, gamma=2.0, focal_smooth=1e-5,
                      weight_dice=1.0, weight_focal=1.0,
                      approx_recip=True, max_block_rows=None):
    """net_output: (B,C,H,W) logits, target: (B,1,H,W) int labels, weight: (C,)."""
    B, C, H, W = net_output.shape
    N = H * W
    assert N % LANE == 0, "H*W must be a multiple of 128"
    R = N // LANE

    if weight is None:
        weight = jnp.ones((C,), jnp.float32)

    # ---- generation-aware VMEM budget & spatial block-size selection -------
    try:
        vmem_cap = int(getattr(pltpu.get_tpu_info(), "vmem_capacity_bytes",
                               64 * 1024 * 1024))
    except Exception:
        vmem_cap = 64 * 1024 * 1024
    vmem_limit = min(vmem_cap * 3 // 4, 64 * 1024 * 1024)   # 48 MiB on v7x, 64 MiB on v5e/v6e
    budget = max(4 * 1024 * 1024, vmem_limit - 8 * 1024 * 1024)

    logit_bytes = jnp.dtype(net_output.dtype).itemsize
    label_dtype = jnp.int8 if C <= 127 else jnp.int32
    label_bytes = jnp.dtype(label_dtype).itemsize
    # double-buffered inputs + a small per-row temp allowance
    per_row = 2 * LANE * (C * logit_bytes + label_bytes) + 4 * LANE
    s_cap = budget // per_row
    s_cap = max(LCHUNK, min(1024, (s_cap // LCHUNK) * LCHUNK))
    if max_block_rows is not None:
        s_cap = min(s_cap, max(LCHUNK, (max_block_rows // LCHUNK) * LCHUNK))

    n_steps = max(1, _cdiv(R, s_cap))
    NC = 2 if R >= 2 * LCHUNK else 1              # spatial-chunk axis (v7x megacore)
    nt = _cdiv(n_steps, NC)
    S = _round_up(_cdiv(R, NC * nt), LCHUNK)      # rows per grid step (mult. of 32)
    R_pad = NC * nt * S
    has_pad = R_pad > R

    logits = net_output.reshape(B, C, R, LANE)
    labels = target.reshape(B, R, LANE).astype(label_dtype)
    if has_pad:
        pad = R_pad - R
        logits = jnp.pad(logits, ((0, 0), (0, 0), (0, pad), (0, 0)))
        labels = jnp.pad(labels, ((0, 0), (0, pad), (0, 0)), constant_values=-1)

    s = float(focal_smooth)
    lo = s / (C - 1) if C > 1 else 0.0
    a_coef = (1.0 - s) - lo
    b_coef = lo + s

    kernel = functools.partial(_dc_focal_kernel,
                               gamma=float(gamma), a_coef=a_coef, b_coef=b_coef,
                               has_pad=has_pad, approx_recip=bool(approx_recip))

    stat_shape = jax.ShapeDtypeStruct((B, NC, C * SUB, LANE), jnp.float32)
    stat_spec = pl.BlockSpec((1, 1, C * SUB, LANE), lambda b, nc, t: (b, nc, 0, 0))
    fl_shape = jax.ShapeDtypeStruct((B, NC, SUB, LANE), jnp.float32)
    fl_spec = pl.BlockSpec((1, 1, SUB, LANE), lambda b, nc, t: (b, nc, 0, 0))

    tp_o, sp_o, cnt_o, fl_o = pl.pallas_call(
        kernel,
        out_shape=(stat_shape, stat_shape, stat_shape, fl_shape),
        grid_spec=pltpu.PrefetchScalarGridSpec(
            num_scalar_prefetch=0,
            grid=(B, NC, nt),
            in_specs=[
                pl.BlockSpec((1, C, S, LANE),
                             lambda b, nc, t: (b, 0, nc * nt + t, 0)),
                pl.BlockSpec((1, S, LANE),
                             lambda b, nc, t: (b, nc * nt + t, 0)),
            ],
            out_specs=[stat_spec, stat_spec, stat_spec, fl_spec],
        ),
        compiler_params=pltpu.CompilerParams(
            dimension_semantics=("parallel", "parallel", "arbitrary"),
            vmem_limit_bytes=int(vmem_limit)),
    )(logits, labels)

    # Tiny final combine in plain JAX (per-batch/per-class scalars only).
    tp = tp_o.reshape(B, NC, C, SUB, LANE).sum(axis=(1, 3, 4))
    sp = sp_o.reshape(B, NC, C, SUB, LANE).sum(axis=(1, 3, 4))
    cnt = cnt_o.reshape(B, NC, C, SUB, LANE).sum(axis=(1, 3, 4))
    fp = sp - tp
    fn = cnt - tp
    w = weight.astype(jnp.float32)[None, :]
    dc = (2.0 * tp + smooth) / (2.0 * tp + fp + fn + smooth) * w
    dc_loss = -jnp.mean(jnp.sum(dc, axis=1))
    focal_loss = jnp.sum(fl_o) / float(B * N)     # padded pixels contribute 0
    return weight_dice * dc_loss + weight_focal * focal_loss


def reference_loss(net_output, target, weight, *,
                   smooth=1.0, gamma=2.0, focal_smooth=1e-5,
                   weight_dice=1.0, weight_focal=1.0):
    """Pure-JAX reference mirroring the PyTorch forward semantics."""
    B, C, H, W = net_output.shape
    x = jax.nn.softmax(net_output.astype(jnp.float32), axis=1)
    lab = target[:, 0].astype(jnp.int32)                       # (B,H,W)
    y = jax.nn.one_hot(lab, C, axis=1, dtype=jnp.float32)      # (B,C,H,W)

    tp = jnp.sum(x * y, axis=(2, 3))
    fp = jnp.sum(x * (1.0 - y), axis=(2, 3))
    fn = jnp.sum((1.0 - x) * y, axis=(2, 3))
    dc = (2.0 * tp + smooth) / (2.0 * tp + fp + fn + smooth) * weight[None, :]
    dc_loss = -jnp.mean(jnp.sum(dc, axis=1))

    y_c = jnp.clip(y, focal_smooth / (C - 1), 1.0 - focal_smooth)
    pt = jnp.sum(y_c * x, axis=1) + focal_smooth
    fl = -((1.0 - pt) ** 2 if gamma == 2.0 else (1.0 - pt) ** gamma) * jnp.log(pt)
    focal_loss = jnp.mean(fl)

    return weight_dice * dc_loss + weight_focal * focal_loss


if __name__ == "__main__":
    key = jax.random.PRNGKey(0)
    k1, k2, k3, k4 = jax.random.split(key, 4)
    weight = jnp.array([1.0, 0.8, 1.2, 1.0], dtype=jnp.float32)

    # Test 1: tiny shape -> single grid step, exercises the padded/masked path.
    B, C, H, W = 2, 4, 16, 16
    net_output = jax.random.normal(k1, (B, C, H, W), dtype=jnp.float32)
    target = jax.random.randint(k2, (B, 1, H, W), 0, C, dtype=jnp.int32)
    loss = jax.block_until_ready(dc_and_focal_loss(net_output, target, weight))
    ref = jax.block_until_ready(reference_loss(net_output, target, weight))
    assert jnp.allclose(loss, ref, rtol=2e-3, atol=2e-3), (float(loss), float(ref))

    # Test 2: larger spatial extent with a forced small block, exercising the
    # 2-chunk "parallel" axis and multi-step accumulation (no padding).
    B2, C2, H2, W2 = 2, 4, 128, 128
    net_output2 = jax.random.normal(k3, (B2, C2, H2, W2), dtype=jnp.float32)
    target2 = jax.random.randint(k4, (B2, 1, H2, W2), 0, C2, dtype=jnp.int32)
    loss2 = jax.block_until_ready(
        dc_and_focal_loss(net_output2, target2, weight, max_block_rows=32))
    ref2 = jax.block_until_ready(reference_loss(net_output2, target2, weight))
    assert jnp.allclose(loss2, ref2, rtol=2e-3, atol=2e-3), (float(loss2), float(ref2))

    print("KERNEL_OK")
</pallas_src>

<mosaic_0001>
module attributes {stable_mosaic.version = 11 : i64} {
  func.func @_dc_focal_kernel(%arg0: i32, %arg1: i32, %arg2: i32, %arg3: memref<1x4x32x128xf32, #tpu.memory_space<vmem>>, %arg4: memref<1x32x128xi8, #tpu.memory_space<vmem>>, %arg5: memref<1x1x32x128xf32, #tpu.memory_space<vmem>>, %arg6: memref<1x1x32x128xf32, #tpu.memory_space<vmem>>, %arg7: memref<1x1x32x128xf32, #tpu.memory_space<vmem>>, %arg8: memref<1x1x8x128xf32, #tpu.memory_space<vmem>>) attributes {dimension_semantics = [#tpu.dimension_semantics<parallel>, #tpu.dimension_semantics<parallel>, #tpu.dimension_semantics<arbitrary>], iteration_bounds = array<i64: 2, 1, 1>, scalar_prefetch = 0 : i64, scratch_operands = 0 : i64, tpu.core_type = #tpu.core_type<tc>, window_params = [{transform_indices = @transform_0, window_bounds = array<i64: 1, 4, 32, 128>}, {transform_indices = @transform_1, window_bounds = array<i64: 1, 32, 128>}, {transform_indices = @transform_2, window_bounds = array<i64: 1, 1, 32, 128>}, {transform_indices = @transform_3, window_bounds = array<i64: 1, 1, 32, 128>}, {transform_indices = @transform_4, window_bounds = array<i64: 1, 1, 32, 128>}, {transform_indices = @transform_5, window_bounds = array<i64: 1, 1, 8, 128>}]} {
    %c0_i32 = arith.constant 0 : i32
    %0 = arith.cmpi eq, %arg2, %c0_i32 : i32
    %1 = arith.extui %0 : i1 to i32
    %c0_i32_0 = arith.constant 0 : i32
    %2 = arith.cmpi ne, %1, %c0_i32_0 : i32
    scf.if %2 {
      %cst_186 = arith.constant 0.000000e+00 : f32
      %436 = vector.broadcast %cst_186 : f32 to vector<1x1x32x128xf32>
      %c0_187 = arith.constant 0 : index
      %c0_188 = arith.constant 0 : index
      %c0_189 = arith.constant 0 : index
      %c0_190 = arith.constant 0 : index
      %437 = vector.load %arg5[%c0_187, %c0_188, %c0_189, %c0_190] : memref<1x1x32x128xf32, #tpu.memory_space<vmem>>, vector<1x1x32x128xf32>
      tpu.vector_store %arg5[%c0_187, %c0_188, %c0_189, %c0_190], %436 {strides = array<i32>} : memref<1x1x32x128xf32, #tpu.memory_space<vmem>>, vector<1x1x32x128xf32>,
      %cst_191 = arith.constant 0.000000e+00 : f32
      %438 = vector.broadcast %cst_191 : f32 to vector<1x1x32x128xf32>
      %c0_192 = arith.constant 0 : index
      %c0_193 = arith.constant 0 : index
      %c0_194 = arith.constant 0 : index
      %c0_195 = arith.constant 0 : index
      %439 = vector.load %arg6[%c0_192, %c0_193, %c0_194, %c0_195] : memref<1x1x32x128xf32, #tpu.memory_space<vmem>>, vector<1x1x32x128xf32>
      tpu.vector_store %arg6[%c0_192, %c0_193, %c0_194, %c0_195], %438 {strides = array<i32>} : memref<1x1x32x128xf32, #tpu.memory_space<vmem>>, vector<1x1x32x128xf32>,
      %cst_196 = arith.constant 0.000000e+00 : f32
      %440 = vector.broadcast %cst_196 : f32 to vector<1x1x32x128xf32>
      %c0_197 = arith.constant 0 : index
      %c0_198 = arith.constant 0 : index
      %c0_199 = arith.constant 0 : index
      %c0_200 = arith.constant 0 : index
      %441 = vector.load %arg7[%c0_197, %c0_198, %c0_199, %c0_200] : memref<1x1x32x128xf32, #tpu.memory_space<vmem>>, vector<1x1x32x128xf32>
      tpu.vector_store %arg7[%c0_197, %c0_198, %c0_199, %c0_200], %440 {strides = array<i32>} : memref<1x1x32x128xf32, #tpu.memory_space<vmem>>, vector<1x1x32x128xf32>,
      %cst_201 = arith.constant 0.000000e+00 : f32
      %442 = vector.broadcast %cst_201 : f32 to vector<1x1x8x128xf32>
      %c0_202 = arith.constant 0 : index
      %c0_203 = arith.constant 0 : index
      %c0_204 = arith.constant 0 : index
      %c0_205 = arith.constant 0 : index
      %443 = vector.load %arg8[%c0_202, %c0_203, %c0_204, %c0_205] : memref<1x1x8x128xf32, #tpu.memory_space<vmem>>, vector<1x1x8x128xf32>
      tpu.vector_store %arg8[%c0_202, %c0_203, %c0_204, %c0_205], %442 {strides = array<i32>} : memref<1x1x8x128xf32, #tpu.memory_space<vmem>>, vector<1x1x8x128xf32>,
    } else {
    }
    %cst = arith.constant 0.000000e+00 : f32
    %3 = vector.broadcast %cst : f32 to vector<8x128xf32>
    %c0_i32_1 = arith.constant 0 : i32
    %c32_i32 = arith.constant 32 : i32
    %4 = arith.muli %c0_i32_1, %c32_i32 : i32
    %5 = tpu.assume_multiple %4, 32 : i32
    %c0 = arith.constant 0 : index
    %6 = arith.index_cast %5 : i32 to index
    %c0_2 = arith.constant 0 : index
    %7 = vector.load %arg4[%c0, %6, %c0_2] : memref<1x32x128xi8, #tpu.memory_space<vmem>>, vector<1x32x128xi8>
    %8 = vector.shape_cast %7 : vector<1x32x128xi8> to vector<32x128xi8>
    %9 = arith.sitofp %8 : vector<32x128xi8> to vector<32x128xf32>
    %c0_i32_3 = arith.constant 0 : i32
    %10 = arith.addi %5, %c0_i32_3 : i32
    %11 = tpu.assume_multiple %10, 8 : i32
    %12 = vector.extract_strided_slice %9 {offsets = [0, 0], sizes = [8, 128], strides = [1, 1]} : vector<32x128xf32> to vector<8x128xf32>
    %c0_4 = arith.constant 0 : index
    %c0_5 = arith.constant 0 : index
    %13 = arith.index_cast %11 : i32 to index
    %c0_6 = arith.constant 0 : index
    %14 = vector.load %arg3[%c0_4, %c0_5, %13, %c0_6] : memref<1x4x32x128xf32, #tpu.memory_space<vmem>>, vector<1x1x8x128xf32>
    %15 = vector.shape_cast %14 : vector<1x1x8x128xf32> to vector<8x128xf32>
    %c0_7 = arith.constant 0 : index
    %c1 = arith.constant 1 : index
    %16 = arith.index_cast %11 : i32 to index
    %c0_8 = arith.constant 0 : index
    %17 = vector.load %arg3[%c0_7, %c1, %16, %c0_8] : memref<1x4x32x128xf32, #tpu.memory_space<vmem>>, vector<1x1x8x128xf32>
    %18 = vector.shape_cast %17 : vector<1x1x8x128xf32> to vector<8x128xf32>
    %c0_9 = arith.constant 0 : index
    %c2 = arith.constant 2 : index
    %19 = arith.index_cast %11 : i32 to index
    %c0_10 = arith.constant 0 : index
    %20 = vector.load %arg3[%c0_9, %c2, %19, %c0_10] : memref<1x4x32x128xf32, #tpu.memory_space<vmem>>, vector<1x1x8x128xf32>
    %21 = vector.shape_cast %20 : vector<1x1x8x128xf32> to vector<8x128xf32>
    %c0_11 = arith.constant 0 : index
    %c3 = arith.constant 3 : index
    %22 = arith.index_cast %11 : i32 to index
    %c0_12 = arith.constant 0 : index
    %23 = vector.load %arg3[%c0_11, %c3, %22, %c0_12] : memref<1x4x32x128xf32, #tpu.memory_space<vmem>>, vector<1x1x8x128xf32>
    %24 = vector.shape_cast %23 : vector<1x1x8x128xf32> to vector<8x128xf32>
    %25 = arith.maximumf %15, %18 : vector<8x128xf32>
    %26 = arith.maximumf %25, %21 : vector<8x128xf32>
    %27 = arith.maximumf %26, %24 : vector<8x128xf32>
    %28 = arith.subf %15, %27 : vector<8x128xf32>
    %29 = math.exp %28 : vector<8x128xf32>
    %30 = arith.subf %18, %27 : vector<8x128xf32>
    %31 = math.exp %30 : vector<8x128xf32>
    %32 = arith.subf %21, %27 : vector<8x128xf32>
    %33 = math.exp %32 : vector<8x128xf32>
    %34 = arith.subf %24, %27 : vector<8x128xf32>
    %35 = math.exp %34 : vector<8x128xf32>
    %36 = arith.addf %29, %31 : vector<8x128xf32>
    %37 = arith.addf %36, %33 : vector<8x128xf32>
    %38 = arith.addf %37, %35 : vector<8x128xf32>
    %39 = tpu.reciprocal %38 {approx = true} : vector<8x128xf32> -> vector<8x128xf32>
    %cst_13 = arith.constant 0.000000e+00 : f32
    %40 = vector.broadcast %cst_13 : f32 to vector<8x128xf32>
    %41 = arith.cmpf oge, %12, %40 : vector<8x128xf32>
    %42 = arith.extui %41 : vector<8x128xi1> to vector<8x128xi32>
    %43 = arith.sitofp %42 : vector<8x128xi32> to vector<8x128xf32>
    %44 = arith.mulf %39, %43 : vector<8x128xf32>
    %45 = arith.mulf %29, %44 : vector<8x128xf32>
    %cst_14 = arith.constant 0.000000e+00 : f32
    %46 = vector.broadcast %cst_14 : f32 to vector<8x128xf32>
    %47 = arith.cmpf oeq, %12, %46 : vector<8x128xf32>
    %48 = arith.extui %47 : vector<8x128xi1> to vector<8x128xi32>
    %49 = arith.sitofp %48 : vector<8x128xi32> to vector<8x128xf32>
    %50 = arith.mulf %45, %49 : vector<8x128xf32>
    %51 = arith.addf %3, %50 : vector<8x128xf32>
    %52 = arith.addf %3, %45 : vector<8x128xf32>
    %53 = arith.addf %3, %49 : vector<8x128xf32>
    %54 = arith.mulf %31, %44 : vector<8x128xf32>
    %cst_15 = arith.constant 1.000000e+00 : f32
    %55 = vector.broadcast %cst_15 : f32 to vector<8x128xf32>
    %56 = arith.cmpf oeq, %12, %55 : vector<8x128xf32>
    %57 = arith.extui %56 : vector<8x128xi1> to vector<8x128xi32>
    %58 = arith.sitofp %57 : vector<8x128xi32> to vector<8x128xf32>
    %59 = arith.mulf %54, %58 : vector<8x128xf32>
    %60 = arith.addf %3, %59 : vector<8x128xf32>
    %61 = arith.addf %3, %54 : vector<8x128xf32>
    %62 = arith.addf %3, %58 : vector<8x128xf32>
    %63 = arith.addf %50, %59 : vector<8x128xf32>
    %64 = arith.mulf %33, %44 : vector<8x128xf32>
    %cst_16 = arith.constant 2.000000e+00 : f32
    %65 = vector.broadcast %cst_16 : f32 to vector<8x128xf32>
    %66 = arith.cmpf oeq, %12, %65 : vector<8x128xf32>
    %67 = arith.extui %66 : vector<8x128xi1> to vector<8x128xi32>
    %68 = arith.sitofp %67 : vector<8x128xi32> to vector<8x128xf32>
    %69 = arith.mulf %64, %68 : vector<8x128xf32>
    %70 = arith.addf %3, %69 : vector<8x128xf32>
    %71 = arith.addf %3, %64 : vector<8x128xf32>
    %72 = arith.addf %3, %68 : vector<8x128xf32>
    %73 = arith.addf %63, %69 : vector<8x128xf32>
    %74 = arith.mulf %35, %44 : vector<8x128xf32>
    %cst_17 = arith.constant 3.000000e+00 : f32
    %75 = vector.broadcast %cst_17 : f32 to vector<8x128xf32>
    %76 = arith.cmpf oeq, %12, %75 : vector<8x128xf32>
    %77 = arith.extui %76 : vector<8x128xi1> to vector<8x128xi32>
    %78 = arith.sitofp %77 : vector<8x128xi32> to vector<8x128xf32>
    %79 = arith.mulf %74, %78 : vector<8x128xf32>
    %80 = arith.addf %3, %79 : vector<8x128xf32>
    %81 = arith.addf %3, %74 : vector<8x128xf32>
    %82 = arith.addf %3, %78 : vector<8x128xf32>
    %83 = arith.addf %73, %79 : vector<8x128xf32>
    %cst_18 = arith.constant 0.999986648 : f32
    %84 = vector.broadcast %cst_18 : f32 to vector<8x128xf32>
    %85 = arith.mulf %84, %83 : vector<8x128xf32>
    %cst_19 = arith.constant 1.33333333E-5 : f32
    %86 = vector.broadcast %cst_19 : f32 to vector<8x128xf32>
    %87 = arith.addf %85, %86 : vector<8x128xf32>
    %cst_20 = arith.constant 1.000000e+00 : f32
    %88 = vector.broadcast %cst_20 : f32 to vector<8x128xf32>
    %89 = arith.subf %88, %87 : vector<8x128xf32>
    %90 = arith.mulf %89, %89 : vector<8x128xf32>
    %cst_21 = arith.constant 0.000000e+00 : f32
    %91 = vector.broadcast %cst_21 : f32 to vector<8x128xf32>
    %92 = arith.subf %91, %90 : vector<8x128xf32>
    %93 = math.log %87 : vector<8x128xf32>
    %94 = arith.mulf %92, %93 : vector<8x128xf32>
    %95 = arith.mulf %94, %43 : vector<8x128xf32>
    %96 = arith.addf %3, %95 : vector<8x128xf32>
    %c8_i32 = arith.constant 8 : i32
    %97 = arith.addi %5, %c8_i32 : i32
    %98 = tpu.assume_multiple %97, 8 : i32
    %99 = vector.extract_strided_slice %9 {offsets = [8, 0], sizes = [8, 128], strides = [1, 1]} : vector<32x128xf32> to vector<8x128xf32>
    %c0_22 = arith.constant 0 : index
    %c0_23 = arith.constant 0 : index
    %100 = arith.index_cast %98 : i32 to index
    %c0_24 = arith.constant 0 : index
    %101 = vector.load %arg3[%c0_22, %c0_23, %100, %c0_24] : memref<1x4x32x128xf32, #tpu.memory_space<vmem>>, vector<1x1x8x128xf32>
    %102 = vector.shape_cast %101 : vector<1x1x8x128xf32> to vector<8x128xf32>
    %c0_25 = arith.constant 0 : index
    %c1_26 = arith.constant 1 : index
    %103 = arith.index_cast %98 : i32 to index
    %c0_27 = arith.constant 0 : index
    %104 = vector.load %arg3[%c0_25, %c1_26, %103, %c0_27] : memref<1x4x32x128xf32, #tpu.memory_space<vmem>>, vector<1x1x8x128xf32>
    %105 = vector.shape_cast %104 : vector<1x1x8x128xf32> to vector<8x128xf32>
    %c0_28 = arith.constant 0 : index
    %c2_29 = arith.constant 2 : index
    %106 = arith.index_cast %98 : i32 to index
    %c0_30 = arith.constant 0 : index
    %107 = vector.load %arg3[%c0_28, %c2_29, %106, %c0_30] : memref<1x4x32x128xf32, #tpu.memory_space<vmem>>, vector<1x1x8x128xf32>
    %108 = vector.shape_cast %107 : vector<1x1x8x128xf32> to vector<8x128xf32>
    %c0_31 = arith.constant 0 : index
    %c3_32 = arith.constant 3 : index
    %109 = arith.index_cast %98 : i32 to index
    %c0_33 = arith.constant 0 : index
    %110 = vector.load %arg3[%c0_31, %c3_32, %109, %c0_33] : memref<1x4x32x128xf32, #tpu.memory_space<vmem>>, vector<1x1x8x128xf32>
    %111 = vector.shape_cast %110 : vector<1x1x8x128xf32> to vector<8x128xf32>
    %112 = arith.maximumf %102, %105 : vector<8x128xf32>
    %113 = arith.maximumf %112, %108 : vector<8x128xf32>
    %114 = arith.maximumf %113, %111 : vector<8x128xf32>
    %115 = arith.subf %102, %114 : vector<8x128xf32>
    %116 = math.exp %115 : vector<8x128xf32>
    %117 = arith.subf %105, %114 : vector<8x128xf32>
    %118 = math.exp %117 : vector<8x128xf32>
    %119 = arith.subf %108, %114 : vector<8x128xf32>
    %120 = math.exp %119 : vector<8x128xf32>
    %121 = arith.subf %111, %114 : vector<8x128xf32>
    %122 = math.exp %121 : vector<8x128xf32>
    %123 = arith.addf %116, %118 : vector<8x128xf32>
    %124 = arith.addf %123, %120 : vector<8x128xf32>
    %125 = arith.addf %124, %122 : vector<8x128xf32>
    %126 = tpu.reciprocal %125 {approx = true} : vector<8x128xf32> -> vector<8x128xf32>
    %cst_34 = arith.constant 0.000000e+00 : f32
    %127 = vector.broadcast %cst_34 : f32 to vector<8x128xf32>
    %128 = arith.cmpf oge, %99, %127 : vector<8x128xf32>
    %129 = arith.extui %128 : vector<8x128xi1> to vector<8x128xi32>
    %130 = arith.sitofp %129 : vector<8x128xi32> to vector<8x128xf32>
    %131 = arith.mulf %126, %130 : vector<8x128xf32>
    %132 = arith.mulf %116, %131 : vector<8x128xf32>
    %cst_35 = arith.constant 0.000000e+00 : f32
    %133 = vector.broadcast %cst_35 : f32 to vector<8x128xf32>
    %134 = arith.cmpf oeq, %99, %133 : vector<8x128xf32>
    %135 = arith.extui %134 : vector<8x128xi1> to vector<8x128xi32>
    %136 = arith.sitofp %135 : vector<8x128xi32> to vector<8x128xf32>
    %137 = arith.mulf %132, %136 : vector<8x128xf32>
    %138 = arith.addf %51, %137 : vector<8x128xf32>
    %139 = arith.addf %52, %132 : vector<8x128xf32>
    %140 = arith.addf %53, %136 : vector<8x128xf32>
    %141 = arith.mulf %118, %131 : vector<8x128xf32>
    %cst_36 = arith.constant 1.000000e+00 : f32
    %142 = vector.broadcast %cst_36 : f32 to vector<8x128xf32>
    %143 = arith.cmpf oeq, %99, %142 : vector<8x128xf32>
    %144 = arith.extui %143 : vector<8x128xi1> to vector<8x128xi32>
    %145 = arith.sitofp %144 : vector<8x128xi32> to vector<8x128xf32>
    %146 = arith.mulf %141, %145 : vector<8x128xf32>
    %147 = arith.addf %60, %146 : vector<8x128xf32>
    %148 = arith.addf %61, %141 : vector<8x128xf32>
    %149 = arith.addf %62, %145 : vector<8x128xf32>
    %150 = arith.addf %137, %146 : vector<8x128xf32>
    %151 = arith.mulf %120, %131 : vector<8x128xf32>
    %cst_37 = arith.constant 2.000000e+00 : f32
    %152 = vector.broadcast %cst_37 : f32 to vector<8x128xf32>
    %153 = arith.cmpf oeq, %99, %152 : vector<8x128xf32>
    %154 = arith.extui %153 : vector<8x128xi1> to vector<8x128xi32>
    %155 = arith.sitofp %154 : vector<8x128xi32> to vector<8x128xf32>
    %156 = arith.mulf %151, %155 : vector<8x128xf32>
    %157 = arith.addf %70, %156 : vector<8x128xf32>
    %158 = arith.addf %71, %151 : vector<8x128xf32>
    %159 = arith.addf %72, %155 : vector<8x128xf32>
    %160 = arith.addf %150, %156 : vector<8x128xf32>
    %161 = arith.mulf %122, %131 : vector<8x128xf32>
    %cst_38 = arith.constant 3.000000e+00 : f32
    %162 = vector.broadcast %cst_38 : f32 to vector<8x128xf32>
    %163 = arith.cmpf oeq, %99, %162 : vector<8x128xf32>
    %164 = arith.extui %163 : vector<8x128xi1> to vector<8x128xi32>
    %165 = arith.sitofp %164 : vector<8x128xi32> to vector<8x128xf32>
    %166 = arith.mulf %161, %165 : vector<8x128xf32>
    %167 = arith.addf %80, %166 : vector<8x128xf32>
    %168 = arith.addf %81, %161 : vector<8x128xf32>
    %169 = arith.addf %82, %165 : vector<8x128xf32>
    %170 = arith.addf %160, %166 : vector<8x128xf32>
    %cst_39 = arith.constant 0.999986648 : f32
    %171 = vector.broadcast %cst_39 : f32 to vector<8x128xf32>
    %172 = arith.mulf %171, %170 : vector<8x128xf32>
    %cst_40 = arith.constant 1.33333333E-5 : f32
    %173 = vector.broadcast %cst_40 : f32 to vector<8x128xf32>
    %174 = arith.addf %172, %173 : vector<8x128xf32>
    %cst_41 = arith.constant 1.000000e+00 : f32
    %175 = vector.broadcast %cst_41 : f32 to vector<8x128xf32>
    %176 = arith.subf %175, %174 : vector<8x128xf32>
    %177 = arith.mulf %176, %176 : vector<8x128xf32>
    %cst_42 = arith.constant 0.000000e+00 : f32
    %178 = vector.broadcast %cst_42 : f32 to vector<8x128xf32>
    %179 = arith.subf %178, %177 : vector<8x128xf32>
    %180 = math.log %174 : vector<8x128xf32>
    %181 = arith.mulf %179, %180 : vector<8x128xf32>
    %182 = arith.mulf %181, %130 : vector<8x128xf32>
    %183 = arith.addf %96, %182 : vector<8x128xf32>
    %c16_i32 = arith.constant 16 : i32
    %184 = arith.addi %5, %c16_i32 : i32
    %185 = tpu.assume_multiple %184, 8 : i32
    %186 = vector.extract_strided_slice %9 {offsets = [16, 0], sizes = [8, 128], strides = [1, 1]} : vector<32x128xf32> to vector<8x128xf32>
    %c0_43 = arith.constant 0 : index
    %c0_44 = arith.constant 0 : index
    %187 = arith.index_cast %185 : i32 to index
    %c0_45 = arith.constant 0 : index
    %188 = vector.load %arg3[%c0_43, %c0_44, %187, %c0_45] : memref<1x4x32x128xf32, #tpu.memory_space<vmem>>, vector<1x1x8x128xf32>
    %189 = vector.shape_cast %188 : vector<1x1x8x128xf32> to vector<8x128xf32>
    %c0_46 = arith.constant 0 : index
    %c1_47 = arith.constant 1 : index
    %190 = arith.index_cast %185 : i32 to index
    %c0_48 = arith.constant 0 : index
    %191 = vector.load %arg3[%c0_46, %c1_47, %190, %c0_48] : memref<1x4x32x128xf32, #tpu.memory_space<vmem>>, vector<1x1x8x128xf32>
    %192 = vector.shape_cast %191 : vector<1x1x8x128xf32> to vector<8x128xf32>
    %c0_49 = arith.constant 0 : index
    %c2_50 = arith.constant 2 : index
    %193 = arith.index_cast %185 : i32 to index
    %c0_51 = arith.constant 0 : index
    %194 = vector.load %arg3[%c0_49, %c2_50, %193, %c0_51] : memref<1x4x32x128xf32, #tpu.memory_space<vmem>>, vector<1x1x8x128xf32>
    %195 = vector.shape_cast %194 : vector<1x1x8x128xf32> to vector<8x128xf32>
    %c0_52 = arith.constant 0 : index
    %c3_53 = arith.constant 3 : index
    %196 = arith.index_cast %185 : i32 to index
    %c0_54 = arith.constant 0 : index
    %197 = vector.load %arg3[%c0_52, %c3_53, %196, %c0_54] : memref<1x4x32x128xf32, #tpu.memory_space<vmem>>, vector<1x1x8x128xf32>
    %198 = vector.shape_cast %197 : vector<1x1x8x128xf32> to vector<8x128xf32>
    %199 = arith.maximumf %189, %192 : vector<8x128xf32>
    %200 = arith.maximumf %199, %195 : vector<8x128xf32>
    %201 = arith.maximumf %200, %198 : vector<8x128xf32>
    %202 = arith.subf %189, %201 : vector<8x128xf32>
    %203 = math.exp %202 : vector<8x128xf32>
    %204 = arith.subf %192, %201 : vector<8x128xf32>
    %205 = math.exp %204 : vector<8x128xf32>
    %206 = arith.subf %195, %201 : vector<8x128xf32>
    %207 = math.exp %206 : vector<8x128xf32>
    %208 = arith.subf %198, %201 : vector<8x128xf32>
    %209 = math.exp %208 : vector<8x128xf32>
    %210 = arith.addf %203, %205 : vector<8x128xf32>
    %211 = arith.addf %210, %207 : vector<8x128xf32>
    %212 = arith.addf %211, %209 : vector<8x128xf32>
    %213 = tpu.reciprocal %212 {approx = true} : vector<8x128xf32> -> vector<8x128xf32>
    %cst_55 = arith.constant 0.000000e+00 : f32
    %214 = vector.broadcast %cst_55 : f32 to vector<8x128xf32>
    %215 = arith.cmpf oge, %186, %214 : vector<8x128xf32>
    %216 = arith.extui %215 : vector<8x128xi1> to vector<8x128xi32>
    %217 = arith.sitofp %216 : vector<8x128xi32> to vector<8x128xf32>
    %218 = arith.mulf %213, %217 : vector<8x128xf32>
    %219 = arith.mulf %203, %218 : vector<8x128xf32>
    %cst_56 = arith.constant 0.000000e+00 : f32
    %220 = vector.broadcast %cst_56 : f32 to vector<8x128xf32>
    %221 = arith.cmpf oeq, %186, %220 : vector<8x128xf32>
    %222 = arith.extui %221 : vector<8x128xi1> to vector<8x128xi32>
    %223 = arith.sitofp %222 : vector<8x128xi32> to vector<8x128xf32>
    %224 = arith.mulf %219, %223 : vector<8x128xf32>
    %225 = arith.addf %138, %224 : vector<8x128xf32>
    %226 = arith.addf %139, %219 : vector<8x128xf32>
    %227 = arith.addf %140, %223 : vector<8x128xf32>
    %228 = arith.mulf %205, %218 : vector<8x128xf32>
    %cst_57 = arith.constant 1.000000e+00 : f32
    %229 = vector.broadcast %cst_57 : f32 to vector<8x128xf32>
    %230 = arith.cmpf oeq, %186, %229 : vector<8x128xf32>
    %231 = arith.extui %230 : vector<8x128xi1> to vector<8x128xi32>
    %232 = arith.sitofp %231 : vector<8x128xi32> to vector<8x128xf32>
    %233 = arith.mulf %228, %232 : vector<8x128xf32>
    %234 = arith.addf %147, %233 : vector<8x128xf32>
    %235 = arith.addf %148, %228 : vector<8x128xf32>
    %236 = arith.addf %149, %232 : vector<8x128xf32>
    %237 = arith.addf %224, %233 : vector<8x128xf32>
    %238 = arith.mulf %207, %218 : vector<8x128xf32>
    %cst_58 = arith.constant 2.000000e+00 : f32
    %239 = vector.broadcast %cst_58 : f32 to vector<8x128xf32>
    %240 = arith.cmpf oeq, %186, %239 : vector<8x128xf32>
    %241 = arith.extui %240 : vector<8x128xi1> to vector<8x128xi32>
    %242 = arith.sitofp %241 : vector<8x128xi32> to vector<8x128xf32>
    %243 = arith.mulf %238, %242 : vector<8x128xf32>
    %244 = arith.addf %157, %243 : vector<8x128xf32>
    %245 = arith.addf %158, %238 : vector<8x128xf32>
    %246 = arith.addf %159, %242 : vector<8x128xf32>
    %247 = arith.addf %237, %243 : vector<8x128xf32>
    %248 = arith.mulf %209, %218 : vector<8x128xf32>
    %cst_59 = arith.constant 3.000000e+00 : f32
    %249 = vector.broadcast %cst_59 : f32 to vector<8x128xf32>
    %250 = arith.cmpf oeq, %186, %249 : vector<8x128xf32>
    %251 = arith.extui %250 : vector<8x128xi1> to vector<8x128xi32>
    %252 = arith.sitofp %251 : vector<8x128xi32> to vector<8x128xf32>
    %253 = arith.mulf %248, %252 : vector<8x128xf32>
    %254 = arith.addf %167, %253 : vector<8x128xf32>
    %255 = arith.addf %168, %248 : vector<8x128xf32>
    %256 = arith.addf %169, %252 : vector<8x128xf32>
    %257 = arith.addf %247, %253 : vector<8x128xf32>
    %cst_60 = arith.constant 0.999986648 : f32
    %258 = vector.broadcast %cst_60 : f32 to vector<8x128xf32>
    %259 = arith.mulf %258, %257 : vector<8x128xf32>
    %cst_61 = arith.constant 1.33333333E-5 : f32
    %260 = vector.broadcast %cst_61 : f32 to vector<8x128xf32>
    %261 = arith.addf %259, %260 : vector<8x128xf32>
    %cst_62 = arith.constant 1.000000e+00 : f32
    %262 = vector.broadcast %cst_62 : f32 to vector<8x128xf32>
    %263 = arith.subf %262, %261 : vector<8x128xf32>
    %264 = arith.mulf %263, %263 : vector<8x128xf32>
    %cst_63 = arith.constant 0.000000e+00 : f32
    %265 = vector.broadcast %cst_63 : f32 to vector<8x128xf32>
    %266 = arith.subf %265, %264 : vector<8x128xf32>
    %267 = math.log %261 : vector<8x128xf32>
    %268 = arith.mulf %266, %267 : vector<8x128xf32>
    %269 = arith.mulf %268, %217 : vector<8x128xf32>
    %270 = arith.addf %183, %269 : vector<8x128xf32>
    %c24_i32 = arith.constant 24 : i32
    %271 = arith.addi %5, %c24_i32 : i32
    %272 = tpu.assume_multiple %271, 8 : i32
    %273 = vector.extract_strided_slice %9 {offsets = [24, 0], sizes = [8, 128], strides = [1, 1]} : vector<32x128xf32> to vector<8x128xf32>
    %c0_64 = arith.constant 0 : index
    %c0_65 = arith.constant 0 : index
    %274 = arith.index_cast %272 : i32 to index
    %c0_66 = arith.constant 0 : index
    %275 = vector.load %arg3[%c0_64, %c0_65, %274, %c0_66] : memref<1x4x32x128xf32, #tpu.memory_space<vmem>>, vector<1x1x8x128xf32>
    %276 = vector.shape_cast %275 : vector<1x1x8x128xf32> to vector<8x128xf32>
    %c0_67 = arith.constant 0 : index
    %c1_68 = arith.constant 1 : index
    %277 = arith.index_cast %272 : i32 to index
    %c0_69 = arith.constant 0 : index
    %278 = vector.load %arg3[%c0_67, %c1_68, %277, %c0_69] : memref<1x4x32x128xf32, #tpu.memory_space<vmem>>, vector<1x1x8x128xf32>
    %279 = vector.shape_cast %278 : vector<1x1x8x128xf32> to vector<8x128xf32>
    %c0_70 = arith.constant 0 : index
    %c2_71 = arith.constant 2 : index
    %280 = arith.index_cast %272 : i32 to index
    %c0_72 = arith.constant 0 : index
    %281 = vector.load %arg3[%c0_70, %c2_71, %280, %c0_72] : memref<1x4x32x128xf32, #tpu.memory_space<vmem>>, vector<1x1x8x128xf32>
    %282 = vector.shape_cast %281 : vector<1x1x8x128xf32> to vector<8x128xf32>
    %c0_73 = arith.constant 0 : index
    %c3_74 = arith.constant 3 : index
    %283 = arith.index_cast %272 : i32 to index
    %c0_75 = arith.constant 0 : index
    %284 = vector.load %arg3[%c0_73, %c3_74, %283, %c0_75] : memref<1x4x32x128xf32, #tpu.memory_space<vmem>>, vector<1x1x8x128xf32>
    %285 = vector.shape_cast %284 : vector<1x1x8x128xf32> to vector<8x128xf32>
    %286 = arith.maximumf %276, %279 : vector<8x128xf32>
    %287 = arith.maximumf %286, %282 : vector<8x128xf32>
    %288 = arith.maximumf %287, %285 : vector<8x128xf32>
    %289 = arith.subf %276, %288 : vector<8x128xf32>
    %290 = math.exp %289 : vector<8x128xf32>
    %291 = arith.subf %279, %288 : vector<8x128xf32>
    %292 = math.exp %291 : vector<8x128xf32>
    %293 = arith.subf %282, %288 : vector<8x128xf32>
    %294 = math.exp %293 : vector<8x128xf32>
    %295 = arith.subf %285, %288 : vector<8x128xf32>
    %296 = math.exp %295 : vector<8x128xf32>
    %297 = arith.addf %290, %292 : vector<8x128xf32>
    %298 = arith.addf %297, %294 : vector<8x128xf32>
    %299 = arith.addf %298, %296 : vector<8x128xf32>
    %300 = tpu.reciprocal %299 {approx = true} : vector<8x128xf32> -> vector<8x128xf32>
    %cst_76 = arith.constant 0.000000e+00 : f32
    %301 = vector.broadcast %cst_76 : f32 to vector<8x128xf32>
    %302 = arith.cmpf oge, %273, %301 : vector<8x128xf32>
    %303 = arith.extui %302 : vector<8x128xi1> to vector<8x128xi32>
    %304 = arith.sitofp %303 : vector<8x128xi32> to vector<8x128xf32>
    %305 = arith.mulf %300, %304 : vector<8x128xf32>
    %306 = arith.mulf %290, %305 : vector<8x128xf32>
    %cst_77 = arith.constant 0.000000e+00 : f32
    %307 = vector.broadcast %cst_77 : f32 to vector<8x128xf32>
    %308 = arith.cmpf oeq, %273, %307 : vector<8x128xf32>
    %309 = arith.extui %308 : vector<8x128xi1> to vector<8x128xi32>
    %310 = arith.sitofp %309 : vector<8x128xi32> to vector<8x128xf32>
    %311 = arith.mulf %306, %310 : vector<8x128xf32>
    %312 = arith.addf %225, %311 : vector<8x128xf32>
    %313 = arith.addf %226, %306 : vector<8x128xf32>
    %314 = arith.addf %227, %310 : vector<8x128xf32>
    %315 = arith.mulf %292, %305 : vector<8x128xf32>
    %cst_78 = arith.constant 1.000000e+00 : f32
    %316 = vector.broadcast %cst_78 : f32 to vector<8x128xf32>
    %317 = arith.cmpf oeq, %273, %316 : vector<8x128xf32>
    %318 = arith.extui %317 : vector<8x128xi1> to vector<8x128xi32>
    %319 = arith.sitofp %318 : vector<8x128xi32> to vector<8x128xf32>
    %320 = arith.mulf %315, %319 : vector<8x128xf32>
    %321 = arith.addf %234, %320 : vector<8x128xf32>
    %322 = arith.addf %235, %315 : vector<8x128xf32>
    %323 = arith.addf %236, %319 : vector<8x128xf32>
    %324 = arith.addf %311, %320 : vector<8x128xf32>
    %325 = arith.mulf %294, %305 : vector<8x128xf32>
    %cst_79 = arith.constant 2.000000e+00 : f32
    %326 = vector.broadcast %cst_79 : f32 to vector<8x128xf32>
    %327 = arith.cmpf oeq, %273, %326 : vector<8x128xf32>
    %328 = arith.extui %327 : vector<8x128xi1> to vector<8x128xi32>
    %329 = arith.sitofp %328 : vector<8x128xi32> to vector<8x128xf32>
    %330 = arith.mulf %325, %329 : vector<8x128xf32>
    %331 = arith.addf %244, %330 : vector<8x128xf32>
    %332 = arith.addf %245, %325 : vector<8x128xf32>
    %333 = arith.addf %246, %329 : vector<8x128xf32>
    %334 = arith.addf %324, %330 : vector<8x128xf32>
    %335 = arith.mulf %296, %305 : vector<8x128xf32>
    %cst_80 = arith.constant 3.000000e+00 : f32
    %336 = vector.broadcast %cst_80 : f32 to vector<8x128xf32>
    %337 = arith.cmpf oeq, %273, %336 : vector<8x128xf32>
    %338 = arith.extui %337 : vector<8x128xi1> to vector<8x128xi32>
    %339 = arith.sitofp %338 : vector<8x128xi32> to vector<8x128xf32>
    %340 = arith.mulf %335, %339 : vector<8x128xf32>
    %341 = arith.addf %254, %340 : vector<8x128xf32>
    %342 = arith.addf %255, %335 : vector<8x128xf32>
    %343 = arith.addf %256, %339 : vector<8x128xf32>
    %344 = arith.addf %334, %340 : vector<8x128xf32>
    %cst_81 = arith.constant 0.999986648 : f32
    %345 = vector.broadcast %cst_81 : f32 to vector<8x128xf32>
    %346 = arith.mulf %345, %344 : vector<8x128xf32>
    %cst_82 = arith.constant 1.33333333E-5 : f32
    %347 = vector.broadcast %cst_82 : f32 to vector<8x128xf32>
    %348 = arith.addf %346, %347 : vector<8x128xf32>
    %cst_83 = arith.constant 1.000000e+00 : f32
    %349 = vector.broadcast %cst_83 : f32 to vector<8x128xf32>
    %350 = arith.subf %349, %348 : vector<8x128xf32>
    %351 = arith.mulf %350, %350 : vector<8x128xf32>
    %cst_84 = arith.constant 0.000000e+00 : f32
    %352 = vector.broadcast %cst_84 : f32 to vector<8x128xf32>
    %353 = arith.subf %352, %351 : vector<8x128xf32>
    %354 = math.log %348 : vector<8x128xf32>
    %355 = arith.mulf %353, %354 : vector<8x128xf32>
    %356 = arith.mulf %355, %304 : vector<8x128xf32>
    %357 = arith.addf %270, %356 : vector<8x128xf32>
    %c1_i32 = arith.constant 1 : i32
    %c0_85 = arith.constant 0 : index
    %c0_86 = arith.constant 0 : index
    %c0_87 = arith.constant 0 : index
    %c0_88 = arith.constant 0 : index
    %358 = vector.load %arg5[%c0_85, %c0_86, %c0_87, %c0_88] : memref<1x1x32x128xf32, #tpu.memory_space<vmem>>, vector<1x1x8x128xf32>
    %359 = vector.shape_cast %358 : vector<1x1x8x128xf32> to vector<8x128xf32>
    %360 = arith.addf %359, %312 : vector<8x128xf32>
    %c0_89 = arith.constant 0 : index
    %c0_90 = arith.constant 0 : index
    %c0_91 = arith.constant 0 : index
    %c0_92 = arith.constant 0 : index
    %361 = vector.load %arg5[%c0_89, %c0_90, %c0_91, %c0_92] : memref<1x1x32x128xf32, #tpu.memory_space<vmem>>, vector<1x1x8x128xf32>
    %362 = vector.shape_cast %361 : vector<1x1x8x128xf32> to vector<8x128xf32>
    %363 = vector.shape_cast %360 : vector<8x128xf32> to vector<1x1x8x128xf32>
    tpu.vector_store %arg5[%c0_89, %c0_90, %c0_91, %c0_92], %363 {strides = array<i32>} : memref<1x1x32x128xf32, #tpu.memory_space<vmem>>, vector<1x1x8x128xf32>,
    %c0_93 = arith.constant 0 : index
    %c0_94 = arith.constant 0 : index
    %c0_95 = arith.constant 0 : index
    %c0_96 = arith.constant 0 : index
    %364 = vector.load %arg6[%c0_93, %c0_94, %c0_95, %c0_96] : memref<1x1x32x128xf32, #tpu.memory_space<vmem>>, vector<1x1x8x128xf32>
    %365 = vector.shape_cast %364 : vector<1x1x8x128xf32> to vector<8x128xf32>
    %366 = arith.addf %365, %313 : vector<8x128xf32>
    %c0_97 = arith.constant 0 : index
    %c0_98 = arith.constant 0 : index
    %c0_99 = arith.constant 0 : index
    %c0_100 = arith.constant 0 : index
    %367 = vector.load %arg6[%c0_97, %c0_98, %c0_99, %c0_100] : memref<1x1x32x128xf32, #tpu.memory_space<vmem>>, vector<1x1x8x128xf32>
    %368 = vector.shape_cast %367 : vector<1x1x8x128xf32> to vector<8x128xf32>
    %369 = vector.shape_cast %366 : vector<8x128xf32> to vector<1x1x8x128xf32>
    tpu.vector_store %arg6[%c0_97, %c0_98, %c0_99, %c0_100], %369 {strides = array<i32>} : memref<1x1x32x128xf32, #tpu.memory_space<vmem>>, vector<1x1x8x128xf32>,
    %c0_101 = arith.constant 0 : index
    %c0_102 = arith.constant 0 : index
    %c0_103 = arith.constant 0 : index
    %c0_104 = arith.constant 0 : index
    %370 = vector.load %arg7[%c0_101, %c0_102, %c0_103, %c0_104] : memref<1x1x32x128xf32, #tpu.memory_space<vmem>>, vector<1x1x8x128xf32>
    %371 = vector.shape_cast %370 : vector<1x1x8x128xf32> to vector<8x128xf32>
    %372 = arith.addf %371, %314 : vector<8x128xf32>
    %c0_105 = arith.constant 0 : index
    %c0_106 = arith.constant 0 : index
    %c0_107 = arith.constant 0 : index
    %c0_108 = arith.constant 0 : index
    %373 = vector.load %arg7[%c0_105, %c0_106, %c0_107, %c0_108] : memref<1x1x32x128xf32, #tpu.memory_space<vmem>>, vector<1x1x8x128xf32>
    %374 = vector.shape_cast %373 : vector<1x1x8x128xf32> to vector<8x128xf32>
    %375 = vector.shape_cast %372 : vector<8x128xf32> to vector<1x1x8x128xf32>
    tpu.vector_store %arg7[%c0_105, %c0_106, %c0_107, %c0_108], %375 {strides = array<i32>} : memref<1x1x32x128xf32, #tpu.memory_space<vmem>>, vector<1x1x8x128xf32>,
    %c0_109 = arith.constant 0 : index
    %c0_110 = arith.constant 0 : index
    %c8 = arith.constant 8 : index
    %c0_111 = arith.constant 0 : index
    %376 = vector.load %arg5[%c0_109, %c0_110, %c8, %c0_111] : memref<1x1x32x128xf32, #tpu.memory_space<vmem>>, vector<1x1x8x128xf32>
    %377 = vector.shape_cast %376 : vector<1x1x8x128xf32> to vector<8x128xf32>
    %378 = arith.addf %377, %321 : vector<8x128xf32>
    %c0_112 = arith.constant 0 : index
    %c0_113 = arith.constant 0 : index
    %c8_114 = arith.constant 8 : index
    %c0_115 = arith.constant 0 : index
    %379 = vector.load %arg5[%c0_112, %c0_113, %c8_114, %c0_115] : memref<1x1x32x128xf32, #tpu.memory_space<vmem>>, vector<1x1x8x128xf32>
    %380 = vector.shape_cast %379 : vector<1x1x8x128xf32> to vector<8x128xf32>
    %381 = vector.shape_cast %378 : vector<8x128xf32> to vector<1x1x8x128xf32>
    tpu.vector_store %arg5[%c0_112, %c0_113, %c8_114, %c0_115], %381 {strides = array<i32>} : memref<1x1x32x128xf32, #tpu.memory_space<vmem>>, vector<1x1x8x128xf32>,
    %c0_116 = arith.constant 0 : index
    %c0_117 = arith.constant 0 : index
    %c8_118 = arith.constant 8 : index
    %c0_119 = arith.constant 0 : index
    %382 = vector.load %arg6[%c0_116, %c0_117, %c8_118, %c0_119] : memref<1x1x32x128xf32, #tpu.memory_space<vmem>>, vector<1x1x8x128xf32>
    %383 = vector.shape_cast %382 : vector<1x1x8x128xf32> to vector<8x128xf32>
    %384 = arith.addf %383, %322 : vector<8x128xf32>
    %c0_120 = arith.constant 0 : index
    %c0_121 = arith.constant 0 : index
    %c8_122 = arith.constant 8 : index
    %c0_123 = arith.constant 0 : index
    %385 = vector.load %arg6[%c0_120, %c0_121, %c8_122, %c0_123] : memref<1x1x32x128xf32, #tpu.memory_space<vmem>>, vector<1x1x8x128xf32>
    %386 = vector.shape_cast %385 : vector<1x1x8x128xf32> to vector<8x128xf32>
    %387 = vector.shape_cast %384 : vector<8x128xf32> to vector<1x1x8x128xf32>
    tpu.vector_store %arg6[%c0_120, %c0_121, %c8_122, %c0_123], %387 {strides = array<i32>} : memref<1x1x32x128xf32, #tpu.memory_space<vmem>>, vector<1x1x8x128xf32>,
    %c0_124 = arith.constant 0 : index
    %c0_125 = arith.constant 0 : index
    %c8_126 = arith.constant 8 : index
    %c0_127 = arith.constant 0 : index
    %388 = vector.load %arg7[%c0_124, %c0_125, %c8_126, %c0_127] : memref<1x1x32x128xf32, #tpu.memory_space<vmem>>, vector<1x1x8x128xf32>
    %389 = vector.shape_cast %388 : vector<1x1x8x128xf32> to vector<8x128xf32>
    %390 = arith.addf %389, %323 : vector<8x128xf32>
    %c0_128 = arith.constant 0 : index
    %c0_129 = arith.constant 0 : index
    %c8_130 = arith.constant 8 : index
    %c0_131 = arith.constant 0 : index
    %391 = vector.load %arg7[%c0_128, %c0_129, %c8_130, %c0_131] : memref<1x1x32x128xf32, #tpu.memory_space<vmem>>, vector<1x1x8x128xf32>
    %392 = vector.shape_cast %391 : vector<1x1x8x128xf32> to vector<8x128xf32>
    %393 = vector.shape_cast %390 : vector<8x128xf32> to vector<1x1x8x128xf32>
    tpu.vector_store %arg7[%c0_128, %c0_129, %c8_130, %c0_131], %393 {strides = array<i32>} : memref<1x1x32x128xf32, #tpu.memory_space<vmem>>, vector<1x1x8x128xf32>,
    %c0_132 = arith.constant 0 : index
    %c0_133 = arith.constant 0 : index
    %c16 = arith.constant 16 : index
    %c0_134 = arith.constant 0 : index
    %394 = vector.load %arg5[%c0_132, %c0_133, %c16, %c0_134] : memref<1x1x32x128xf32, #tpu.memory_space<vmem>>, vector<1x1x8x128xf32>
    %395 = vector.shape_cast %394 : vector<1x1x8x128xf32> to vector<8x128xf32>
    %396 = arith.addf %395, %331 : vector<8x128xf32>
    %c0_135 = arith.constant 0 : index
    %c0_136 = arith.constant 0 : index
    %c16_137 = arith.constant 16 : index
    %c0_138 = arith.constant 0 : index
    %397 = vector.load %arg5[%c0_135, %c0_136, %c16_137, %c0_138] : memref<1x1x32x128xf32, #tpu.memory_space<vmem>>, vector<1x1x8x128xf32>
    %398 = vector.shape_cast %397 : vector<1x1x8x128xf32> to vector<8x128xf32>
    %399 = vector.shape_cast %396 : vector<8x128xf32> to vector<1x1x8x128xf32>
    tpu.vector_store %arg5[%c0_135, %c0_136, %c16_137, %c0_138], %399 {strides = array<i32>} : memref<1x1x32x128xf32, #tpu.memory_space<vmem>>, vector<1x1x8x128xf32>,
    %c0_139 = arith.constant 0 : index
    %c0_140 = arith.constant 0 : index
    %c16_141 = arith.constant 16 : index
    %c0_142 = arith.constant 0 : index
    %400 = vector.load %arg6[%c0_139, %c0_140, %c16_141, %c0_142] : memref<1x1x32x128xf32, #tpu.memory_space<vmem>>, vector<1x1x8x128xf32>
    %401 = vector.shape_cast %400 : vector<1x1x8x128xf32> to vector<8x128xf32>
    %402 = arith.addf %401, %332 : vector<8x128xf32>
    %c0_143 = arith.constant 0 : index
    %c0_144 = arith.constant 0 : index
    %c16_145 = arith.constant 16 : index
    %c0_146 = arith.constant 0 : index
    %403 = vector.load %arg6[%c0_143, %c0_144, %c16_145, %c0_146] : memref<1x1x32x128xf32, #tpu.memory_space<vmem>>, vector<1x1x8x128xf32>
    %404 = vector.shape_cast %403 : vector<1x1x8x128xf32> to vector<8x128xf32>
    %405 = vector.shape_cast %402 : vector<8x128xf32> to vector<1x1x8x128xf32>
    tpu.vector_store %arg6[%c0_143, %c0_144, %c16_145, %c0_146], %405 {strides = array<i32>} : memref<1x1x32x128xf32, #tpu.memory_space<vmem>>, vector<1x1x8x128xf32>,
    %c0_147 = arith.constant 0 : index
    %c0_148 = arith.constant 0 : index
    %c16_149 = arith.constant 16 : index
    %c0_150 = arith.constant 0 : index
    %406 = vector.load %arg7[%c0_147, %c0_148, %c16_149, %c0_150] : memref<1x1x32x128xf32, #tpu.memory_space<vmem>>, vector<1x1x8x128xf32>
    %407 = vector.shape_cast %406 : vector<1x1x8x128xf32> to vector<8x128xf32>
    %408 = arith.addf %407, %333 : vector<8x128xf32>
    %c0_151 = arith.constant 0 : index
    %c0_152 = arith.constant 0 : index
    %c16_153 = arith.constant 16 : index
    %c0_154 = arith.constant 0 : index
    %409 = vector.load %arg7[%c0_151, %c0_152, %c16_153, %c0_154] : memref<1x1x32x128xf32, #tpu.memory_space<vmem>>, vector<1x1x8x128xf32>
    %410 = vector.shape_cast %409 : vector<1x1x8x128xf32> to vector<8x128xf32>
    %411 = vector.shape_cast %408 : vector<8x128xf32> to vector<1x1x8x128xf32>
    tpu.vector_store %arg7[%c0_151, %c0_152, %c16_153, %c0_154], %411 {strides = array<i32>} : memref<1x1x32x128xf32, #tpu.memory_space<vmem>>, vector<1x1x8x128xf32>,
    %c0_155 = arith.constant 0 : index
    %c0_156 = arith.constant 0 : index
    %c24 = arith.constant 24 : index
    %c0_157 = arith.constant 0 : index
    %412 = vector.load %arg5[%c0_155, %c0_156, %c24, %c0_157] : memref<1x1x32x128xf32, #tpu.memory_space<vmem>>, vector<1x1x8x128xf32>
    %413 = vector.shape_cast %412 : vector<1x1x8x128xf32> to vector<8x128xf32>
    %414 = arith.addf %413, %341 : vector<8x128xf32>
    %c0_158 = arith.constant 0 : index
    %c0_159 = arith.constant 0 : index
    %c24_160 = arith.constant 24 : index
    %c0_161 = arith.constant 0 : index
    %415 = vector.load %arg5[%c0_158, %c0_159, %c24_160, %c0_161] : memref<1x1x32x128xf32, #tpu.memory_space<vmem>>, vector<1x1x8x128xf32>
    %416 = vector.shape_cast %415 : vector<1x1x8x128xf32> to vector<8x128xf32>
    %417 = vector.shape_cast %414 : vector<8x128xf32> to vector<1x1x8x128xf32>
    tpu.vector_store %arg5[%c0_158, %c0_159, %c24_160, %c0_161], %417 {strides = array<i32>} : memref<1x1x32x128xf32, #tpu.memory_space<vmem>>, vector<1x1x8x128xf32>,
    %c0_162 = arith.constant 0 : index
    %c0_163 = arith.constant 0 : index
    %c24_164 = arith.constant 24 : index
    %c0_165 = arith.constant 0 : index
    %418 = vector.load %arg6[%c0_162, %c0_163, %c24_164, %c0_165] : memref<1x1x32x128xf32, #tpu.memory_space<vmem>>, vector<1x1x8x128xf32>
    %419 = vector.shape_cast %418 : vector<1x1x8x128xf32> to vector<8x128xf32>
    %420 = arith.addf %419, %342 : vector<8x128xf32>
    %c0_166 = arith.constant 0 : index
    %c0_167 = arith.constant 0 : index
    %c24_168 = arith.constant 24 : index
    %c0_169 = arith.constant 0 : index
    %421 = vector.load %arg6[%c0_166, %c0_167, %c24_168, %c0_169] : memref<1x1x32x128xf32, #tpu.memory_space<vmem>>, vector<1x1x8x128xf32>
    %422 = vector.shape_cast %421 : vector<1x1x8x128xf32> to vector<8x128xf32>
    %423 = vector.shape_cast %420 : vector<8x128xf32> to vector<1x1x8x128xf32>
    tpu.vector_store %arg6[%c0_166, %c0_167, %c24_168, %c0_169], %423 {strides = array<i32>} : memref<1x1x32x128xf32, #tpu.memory_space<vmem>>, vector<1x1x8x128xf32>,
    %c0_170 = arith.constant 0 : index
    %c0_171 = arith.constant 0 : index
    %c24_172 = arith.constant 24 : index
    %c0_173 = arith.constant 0 : index
    %424 = vector.load %arg7[%c0_170, %c0_171, %c24_172, %c0_173] : memref<1x1x32x128xf32, #tpu.memory_space<vmem>>, vector<1x1x8x128xf32>
    %425 = vector.shape_cast %424 : vector<1x1x8x128xf32> to vector<8x128xf32>
    %426 = arith.addf %425, %343 : vector<8x128xf32>
    %c0_174 = arith.constant 0 : index
    %c0_175 = arith.constant 0 : index
    %c24_176 = arith.constant 24 : index
    %c0_177 = arith.constant 0 : index
    %427 = vector.load %arg7[%c0_174, %c0_175, %c24_176, %c0_177] : memref<1x1x32x128xf32, #tpu.memory_space<vmem>>, vector<1x1x8x128xf32>
    %428 = vector.shape_cast %427 : vector<1x1x8x128xf32> to vector<8x128xf32>
    %429 = vector.shape_cast %426 : vector<8x128xf32> to vector<1x1x8x128xf32>
    tpu.vector_store %arg7[%c0_174, %c0_175, %c24_176, %c0_177], %429 {strides = array<i32>} : memref<1x1x32x128xf32, #tpu.memory_space<vmem>>, vector<1x1x8x128xf32>,
    %c0_178 = arith.constant 0 : index
    %c0_179 = arith.constant 0 : index
    %c0_180 = arith.constant 0 : index
    %c0_181 = arith.constant 0 : index
    %430 = vector.load %arg8[%c0_178, %c0_179, %c0_180, %c0_181] : memref<1x1x8x128xf32, #tpu.memory_space<vmem>>, vector<1x1x8x128xf32>
    %431 = vector.shape_cast %430 : vector<1x1x8x128xf32> to vector<8x128xf32>
    %432 = arith.addf %431, %357 : vector<8x128xf32>
    %c0_182 = arith.constant 0 : index
    %c0_183 = arith.constant 0 : index
    %c0_184 = arith.constant 0 : index
    %c0_185 = arith.constant 0 : index
    %433 = vector.load %arg8[%c0_182, %c0_183, %c0_184, %c0_185] : memref<1x1x8x128xf32, #tpu.memory_space<vmem>>, vector<1x1x8x128xf32>
    %434 = vector.shape_cast %433 : vector<1x1x8x128xf32> to vector<8x128xf32>
    %435 = vector.shape_cast %432 : vector<8x128xf32> to vector<1x1x8x128xf32>
    tpu.vector_store %arg8[%c0_182, %c0_183, %c0_184, %c0_185], %435 {strides = array<i32>} : memref<1x1x8x128xf32, #tpu.memory_space<vmem>>, vector<1x1x8x128xf32>,
    return
  }
  func.func @transform_0(%arg0: i32, %arg1: i32, %arg2: i32) -> (i32, i32, i32, i32) {
    %c1_i32 = arith.constant 1 : i32
    %0 = arith.muli %arg1, %c1_i32 : i32
    %1 = arith.addi %0, %arg2 : i32
    %c0_i32 = arith.constant 0 : i32
    %c0_i32_0 = arith.constant 0 : i32
    %c0_i32_1 = arith.constant 0 : i32
    return %arg0, %c0_i32, %1, %c0_i32_0 : i32, i32, i32, i32
  }
  func.func @transform_1(%arg0: i32, %arg1: i32, %arg2: i32) -> (i32, i32, i32) {
    %c1_i32 = arith.constant 1 : i32
    %0 = arith.muli %arg1, %c1_i32 : i32
    %1 = arith.addi %0, %arg2 : i32
    %c0_i32 = arith.constant 0 : i32
    %c0_i32_0 = arith.constant 0 : i32
    return %arg0, %1, %c0_i32 : i32, i32, i32
  }
  func.func @transform_2(%arg0: i32, %arg1: i32, %arg2: i32) -> (i32, i32, i32, i32) {
    %c0_i32 = arith.constant 0 : i32
    %c0_i32_0 = arith.constant 0 : i32
    %c0_i32_1 = arith.constant 0 : i32
    return %arg0, %arg1, %c0_i32, %c0_i32_0 : i32, i32, i32, i32
  }
  func.func @transform_3(%arg0: i32, %arg1: i32, %arg2: i32) -> (i32, i32, i32, i32) {
    %c0_i32 = arith.constant 0 : i32
    %c0_i32_0 = arith.constant 0 : i32
    %c0_i32_1 = arith.constant 0 : i32
    return %arg0, %arg1, %c0_i32, %c0_i32_0 : i32, i32, i32, i32
  }
  func.func @transform_4(%arg0: i32, %arg1: i32, %arg2: i32) -> (i32, i32, i32, i32) {
    %c0_i32 = arith.constant 0 : i32
    %c0_i32_0 = arith.constant 0 : i32
    %c0_i32_1 = arith.constant 0 : i32
    return %arg0, %arg1, %c0_i32, %c0_i32_0 : i32, i32, i32, i32
  }
  func.func @transform_5(%arg0: i32, %arg1: i32, %arg2: i32) -> (i32, i32, i32, i32) {
    %c0_i32 = arith.constant 0 : i32
    %c0_i32_0 = arith.constant 0 : i32
    %c0_i32_1 = arith.constant 0 : i32
    return %arg0, %arg1, %c0_i32, %c0_i32_0 : i32, i32, i32, i32
  }
}

</mosaic_0001>

<llo_original>
// kernel: tpu_custom_call.1
$region0: #{tpu_custom_call.1}
  #allocation0 [shape = 'u32[]', space=smem, size = 0x4, offset = 0x4, fixed_abs, tag = 'smem constant byte address 0x4 - core index']
  #allocation1 [shape = 'u32[72,128]{1,0:T(1,128)}', space=vmem, size = 0x9000, scoped, tag = 'internal scratch']
  %s0 = inlined_call_operand.hbm [shape: f32[2,4,32,128], index: 0, kind: input, shape index: {}]
  %s1 = inlined_call_operand.hbm [shape: s8[2,32,128], index: 1, kind: input, shape index: {}]
  %s2 = inlined_call_operand.hbm [shape: f32[2,1,32,128], index: 2, kind: output, shape index: {0}]
  %s3 = inlined_call_operand.hbm [shape: f32[2,1,32,128], index: 3, kind: output, shape index: {1}]
  %s4 = inlined_call_operand.hbm [shape: f32[2,1,32,128], index: 4, kind: output, shape index: {2}]
  %s5 = inlined_call_operand.hbm [shape: f32[2,1,8,128], index: 5, kind: output, shape index: {3}]
  %6 = xla_tuple %s2, %s3, %s4, %s5
  %s7 = sld [smem:[#allocation0]]
  $region77: #{tpu_custom_call.1} parent=0
    _
  %s9 = ssub.s32 1, %s7
  %s10 = scalar_select 0, %s9, %s7
  $region1: #{tpu_custom_call.1} parent=0
    #allocation2 [shape = 'u8[131072]{0}', space=vmem, size = 0x20000, scoped, tag = 'input window, operand 0']
    #allocation3 [shape = 's32[2]{0}', space=sflag, size = 0x8, scoped, tag = 'scoped memory for tpu_custom_call.1']
    #allocation4 [shape = 's32[2]{0}', space=sflag, size = 0x8, scoped, tag = 'scoped memory for tpu_custom_call.1']
    #allocation5 [shape = 'u8[8192]{0}', space=vmem, size = 0x2000, scoped, tag = 'input window, operand 1']
    #allocation6 [shape = 's32[2]{0}', space=sflag, size = 0x8, scoped, tag = 'scoped memory for tpu_custom_call.1']
    #allocation7 [shape = 'u8[32768]{0}', space=vmem, size = 0x8000, scoped, tag = 'output window, operand 0']
    #allocation8 [shape = 'u8[32768]{0}', space=vmem, size = 0x8000, scoped, tag = 'output window, operand 1']
    #allocation9 [shape = 's32[2]{0}', space=sflag, size = 0x8, scoped, tag = 'scoped memory for tpu_custom_call.1']
    #allocation10 [shape = 'u8[32768]{0}', space=vmem, size = 0x8000, scoped, tag = 'output window, operand 2']
    #allocation11 [shape = 'u8[8192]{0}', space=vmem, size = 0x2000, scoped, tag = 'output window, operand 3']
    #allocation12 [shape = 's32[2]{0}', space=sflag, size = 0x8, scoped, tag = 'scoped memory for tpu_custom_call.1']
    %11 = vsyncpa [#allocation3], 0
    %s12 = scalar_lea.sflag [#allocation3], 1
    %13 = vsyncpa %s12, 0
    %14 = vsyncpa [#allocation6], 0
    %s15 = scalar_lea.sflag [#allocation6], 1
    %16 = vsyncpa %s15, 0
    %17 = vsyncpa [#allocation4], 0
    %s18 = scalar_lea.sflag [#allocation4], 1
    %19 = vsyncpa %s18, 0
    %20 = vsyncpa [#allocation9], 0
    %s21 = scalar_lea.sflag [#allocation9], 1
    %22 = vsyncpa %s21, 0
    %23 = vsyncpa [#allocation12], 0
    %s24 = scalar_lea.sflag [#allocation12], 1
    %25 = vsyncpa %s24, 0
    loop: start=0, step=1, limit=4
    $region2: #{tpu_custom_call.1} parent=1 // loop_pre_header
      _
    $region3: #{tpu_custom_call.1} parent=1 // loop_header
      %s27 = sphi 0, %s31
      %p28 = scmp.ge.s32.totalorder %s27, 4
      %s34 = sphi 0, %s53
      %s35 = sphi 0, %s49
      %s36 = sphi 0, %s45
      %s37 = sphi 0, %s34
      %s38 = sphi 0, %s35
      %s39 = sphi 0, %s36
      %s40 = sphi 0, %s37
      %s41 = sphi 0, %s38
      %s42 = sphi 0, %s39
      %s60 = sphi 0, %s62
      %s63 = sphi 0, %s60
      %s64 = sphi 0, %s63
      %s80 = sphi 0, %s64
      %s90 = sphi 0, %s92
      %s93 = sphi 0, %s90
      %s94 = sphi 0, %s93
      %s110 = sphi 0, %s94
      %s118 = sphi 0, %s120
      %s121 = sphi 0, %s118
      %s122 = sphi 0, %s121
      %s138 = sphi 0, %s122
      %s146 = sphi 0, %s148
      %s149 = sphi 0, %s146
      %s150 = sphi 0, %s149
      %s166 = sphi 0, %s150
      %s174 = sphi 0, %s176
      %s177 = sphi 0, %s174
      %s178 = sphi 0, %s177
      %s194 = sphi 0, %s178
      %s202 = sphi 0, %s204
      %s205 = sphi 0, %s202
      %s206 = sphi 0, %s205
      %s222 = sphi 0, %s206
    $region4: #{tpu_custom_call.1} parent=1 // loop_header_branch
      %30 = sbr.rel (%p28) target = $region8
    $region5: #{tpu_custom_call.1} parent=1 // loop_body
      %s32 = ssub.s32 %s27, 1
      %s33 = ssub.s32 %s27, 2
      %s43 = sadd.s32 1, %s36
      %p44 = scmp.ge.s32.totalorder %s43, 1
      %s45 = scalar_select %p44, 0, %s43
      %s46 = sadd.s32 1, %s35
      %s47 = scalar_select %p44, %s46, %s35
      %p48 = scmp.ge.s32.totalorder %s47, 1
      %s49 = scalar_select %p48, 0, %s47
      %s50 = sadd.s32 1, %s34
      %s51 = scalar_select %p48, %s50, %s34
      %p52 = scmp.ge.s32.totalorder %s51, 2
      %s53 = scalar_select %p52, 0, %s51
      %s54 = sadd.s32 %s35, %s36
      %s55 = sadd.s32 %s49, %s45
      %s56 = ssub.s32 %s34, %s53
      %s57 = ssub.s32 %s54, %s55
      %s58 = sor.u32 %s56, %s57
      %p59 = scmp.eq.s32.totalorder %s58, 0
      %s61 = sadd.s32 %s60, 1
      %s62 = scalar_select %p59, %s60, %s61
      %p65 = pneg %p59
      %p66 = scmp.eq.s32.totalorder %s27, 1
      %p67 = por %p65, %p66
      %p68 = scmp.ne.s32.totalorder %s60, %s63
      %p69 = scmp.eq.s32.totalorder %s27, 0
      %p70 = por %p68, %p69
      %p71 = scmp.ne.s32.totalorder %s60, %s63
      %p72 = scmp.eq.s32.totalorder %s32, 1
      %p73 = por %p71, %p72
      %p74 = scmp.ne.s32.totalorder %s63, %s64
      %p75 = scmp.eq.s32.totalorder %s32, 0
      %p76 = por %p74, %p75
      %p77 = scmp.ne.s32.totalorder %s63, %s64
      %p78 = scmp.eq.s32.totalorder %s33, 1
      %p79 = por %p77, %p78
      %p81 = scmp.ne.s32.totalorder %s64, %s80
      %p82 = scmp.eq.s32.totalorder %s33, 0
      %p83 = por %p81, %p82
      %s84 = sadd.s32 %s35, %s36
      %s85 = sadd.s32 %s49, %s45
      %s86 = ssub.s32 %s34, %s53
      %s87 = ssub.s32 %s84, %s85
      %s88 = sor.u32 %s86, %s87
      %p89 = scmp.eq.s32.totalorder %s88, 0
      %s91 = sadd.s32 %s90, 1
      %s92 = scalar_select %p89, %s90, %s91
      %p95 = pneg %p89
      %p96 = scmp.eq.s32.totalorder %s27, 1
      %p97 = por %p95, %p96
      %p98 = scmp.ne.s32.totalorder %s90, %s93
      %p99 = scmp.eq.s32.totalorder %s27, 0
      %p100 = por %p98, %p99
      %p101 = scmp.ne.s32.totalorder %s90, %s93
      %p102 = scmp.eq.s32.totalorder %s32, 1
      %p103 = por %p101, %p102
      %p104 = scmp.ne.s32.totalorder %s93, %s94
      %p105 = scmp.eq.s32.totalorder %s32, 0
      %p106 = por %p104, %p105
      %p107 = scmp.ne.s32.totalorder %s93, %s94
      %p108 = scmp.eq.s32.totalorder %s33, 1
      %p109 = por %p107, %p108
      %p111 = scmp.ne.s32.totalorder %s94, %s110
      %p112 = scmp.eq.s32.totalorder %s33, 0
      %p113 = por %p111, %p112
      %s114 = ssub.s32 %s34, %s53
      %s115 = ssub.s32 %s35, %s49
      %s116 = sor.u32 %s114, %s115
      %p117 = scmp.eq.s32.totalorder %s116, 0
      %s119 = sadd.s32 %s118, 1
      %s120 = scalar_select %p117, %s118, %s119
      %p123 = pneg %p117
      %p124 = scmp.eq.s32.totalorder %s27, 1
      %p125 = por %p123, %p124
      %p126 = scmp.ne.s32.totalorder %s118, %s121
      %p127 = scmp.eq.s32.totalorder %s27, 0
      %p128 = por %p126, %p127
      %p129 = scmp.ne.s32.totalorder %s118, %s121
      %p130 = scmp.eq.s32.totalorder %s32, 1
      %p131 = por %p129, %p130
      %p132 = scmp.ne.s32.totalorder %s121, %s122
      %p133 = scmp.eq.s32.totalorder %s32, 0
      %p134 = por %p132, %p133
      %p135 = scmp.ne.s32.totalorder %s121, %s122
      %p136 = scmp.eq.s32.totalorder %s33, 1
      %p137 = por %p135, %p136
      %p139 = scmp.ne.s32.totalorder %s122, %s138
      %p140 = scmp.eq.s32.totalorder %s33, 0
      %p141 = por %p139, %p140
      %s142 = ssub.s32 %s34, %s53
      %s143 = ssub.s32 %s35, %s49
      %s144 = sor.u32 %s142, %s143
      %p145 = scmp.eq.s32.totalorder %s144, 0
      %s147 = sadd.s32 %s146, 1
      %s148 = scalar_select %p145, %s146, %s147
      %p151 = pneg %p145
      %p152 = scmp.eq.s32.totalorder %s27, 1
      %p153 = por %p151, %p152
      %p154 = scmp.ne.s32.totalorder %s146, %s149
      %p155 = scmp.eq.s32.totalorder %s27, 0
      %p156 = por %p154, %p155
      %p157 = scmp.ne.s32.totalorder %s146, %s149
      %p158 = scmp.eq.s32.totalorder %s32, 1
      %p159 = por %p157, %p158
      %p160 = scmp.ne.s32.totalorder %s149, %s150
      %p161 = scmp.eq.s32.totalorder %s32, 0
      %p162 = por %p160, %p161
      %p163 = scmp.ne.s32.totalorder %s149, %s150
      %p164 = scmp.eq.s32.totalorder %s33, 1
      %p165 = por %p163, %p164
      %p167 = scmp.ne.s32.totalorder %s150, %s166
      %p168 = scmp.eq.s32.totalorder %s33, 0
      %p169 = por %p167, %p168
      %s170 = ssub.s32 %s34, %s53
      %s171 = ssub.s32 %s35, %s49
      %s172 = sor.u32 %s170, %s171
      %p173 = scmp.eq.s32.totalorder %s172, 0
      %s175 = sadd.s32 %s174, 1
      %s176 = scalar_select %p173, %s174, %s175
      %p179 = pneg %p173
      %p180 = scmp.eq.s32.totalorder %s27, 1
      %p181 = por %p179, %p180
      %p182 = scmp.ne.s32.totalorder %s174, %s177
      %p183 = scmp.eq.s32.totalorder %s27, 0
      %p184 = por %p182, %p183
      %p185 = scmp.ne.s32.totalorder %s174, %s177
      %p186 = scmp.eq.s32.totalorder %s32, 1
      %p187 = por %p185, %p186
      %p188 = scmp.ne.s32.totalorder %s177, %s178
      %p189 = scmp.eq.s32.totalorder %s32, 0
      %p190 = por %p188, %p189
      %p191 = scmp.ne.s32.totalorder %s177, %s178
      %p192 = scmp.eq.s32.totalorder %s33, 1
      %p193 = por %p191, %p192
      %p195 = scmp.ne.s32.totalorder %s178, %s194
      %p196 = scmp.eq.s32.totalorder %s33, 0
      %p197 = por %p195, %p196
      %s198 = ssub.s32 %s34, %s53
      %s199 = ssub.s32 %s35, %s49
      %s200 = sor.u32 %s198, %s199
      %p201 = scmp.eq.s32.totalorder %s200, 0
      %s203 = sadd.s32 %s202, 1
      %s204 = scalar_select %p201, %s202, %s203
      %p207 = pneg %p201
      %p208 = scmp.eq.s32.totalorder %s27, 1
      %p209 = por %p207, %p208
      %p210 = scmp.ne.s32.totalorder %s202, %s205
      %p211 = scmp.eq.s32.totalorder %s27, 0
      %p212 = por %p210, %p211
      %p213 = scmp.ne.s32.totalorder %s202, %s205
      %p214 = scmp.eq.s32.totalorder %s32, 1
      %p215 = por %p213, %p214
      %p216 = scmp.ne.s32.totalorder %s205, %s206
      %p217 = scmp.eq.s32.totalorder %s32, 0
      %p218 = por %p216, %p217
      %p219 = scmp.ne.s32.totalorder %s205, %s206
      %p220 = scmp.eq.s32.totalorder %s33, 1
      %p221 = por %p219, %p220
      %p223 = scmp.ne.s32.totalorder %s206, %s222
      %p224 = scmp.eq.s32.totalorder %s33, 0
      %p225 = por %p223, %p224
      %p226 = scmp.le.s32.totalorder 1, %s27
      %p227 = scmp.lt.s32.totalorder %s27, 3
      %p228 = pnand %p226, %p227
      %p229 = pneg %p228
      // Predicated region
      $region9: #{tpu_custom_call.1} parent=5 // pred_check
        _
      $region10: #{tpu_custom_call.1} parent=5 // pred_check_branch
        %231 = sbr.rel (%p228) target = $region12
      $region11: #{tpu_custom_call.1} parent=5 // pred_region
        %s232 = ssub.s32 %s27, 1
      $region12: #{tpu_custom_call.1} parent=5 // pred_fallthru
        _
      %p233 = scmp.lt.s32.totalorder %s27, 2
      // Predicated region
      $region13: #{tpu_custom_call.1} parent=5 // pred_check
        %p234 = pneg %p233
      $region14: #{tpu_custom_call.1} parent=5 // pred_check_branch
        %236 = sbr.rel (%p234) target = $region16
      $region15: #{tpu_custom_call.1} parent=5 // pred_region
        // Predicated region
        $region17: #{tpu_custom_call.1} parent=15 // pred_check
          %p237 = pneg %p70
        $region18: #{tpu_custom_call.1} parent=15 // pred_check_branch
          %239 = sbr.rel (%p237) target = $region20
        $region19: #{tpu_custom_call.1} parent=15 // pred_region
          %s240 = sand.u32 %s60, 1
          %s241 = scalar_lea.sflag [#allocation3], %s240
          %s242 = sand.u32 %s60, 1
          %s243 = smul.addr %s242, 128
          %s244 = scalar_lea.vmem [#allocation2], %s243
          %s245 = sadd.s32 %s35, %s36
          %s246 = smul.u32 4, %s245
          %248 = vsyncadd %s241, 0
          %s249 = smul.addr %s34, 16
          %s250 = sadd.s32 %s246, %s249
          %s251 = smul.addr %s250, 8
          %s252 = scalar_lea.hbm %s0, %s251
          %s253 = sshll.u32 %s252, 4
          %s254 = int_to_ptr.hbm [resolvable:$true] %s253
          %s255 = sshll.u32 %s244, 4
          %s256 = int_to_ptr.vmem [resolvable:$true] %s255
          %261 = dma.hbm_to_vmem [thread:$0]  %s254, 2048, %s256, %s241, 128, 128, 8
        $region20: #{tpu_custom_call.1} parent=15 // pred_fallthru
          _
        // Predicated region
        $region21: #{tpu_custom_call.1} parent=15 // pred_check
          %p262 = pneg %p100
        $region22: #{tpu_custom_call.1} parent=15 // pred_check_branch
          %264 = sbr.rel (%p262) target = $region24
        $region23: #{tpu_custom_call.1} parent=15 // pred_region
          %s265 = sand.u32 %s90, 1
          %s266 = scalar_lea.sflag [#allocation6], %s265
          %s267 = sand.u32 %s90, 1
          %s268 = smul.addr %s267, 8
          %s269 = scalar_lea.vmem [#allocation5], %s268
          %s270 = sadd.s32 %s35, %s36
          %272 = vsyncadd %s266, 0
          %s273 = sadd.s32 %s270, %s34
          %s274 = smul.addr %s273, 8
          %s275 = scalar_lea.hbm %s1, %s274
          %s277 = sshll.u32 %s275, 4
          %s278 = int_to_ptr.hbm [resolvable:$true] %s277
          %s279 = sshll.u32 %s269, 4
          %s280 = int_to_ptr.vmem [resolvable:$true] %s279
          %282 = dma.hbm_to_vmem [thread:$0]  %s278, 128, %s280, %s266
        $region24: #{tpu_custom_call.1} parent=15 // pred_fallthru
          _
      $region16: #{tpu_custom_call.1} parent=5 // pred_fallthru
        _
      %p283 = scmp.le.s32.totalorder 1, %s27
      %p284 = scmp.lt.s32.totalorder %s27, 3
      %p285 = pnand %p283, %p284
      %p286 = pneg %p285
      // Predicated region
      $region25: #{tpu_custom_call.1} parent=5 // pred_check
        _
      $region26: #{tpu_custom_call.1} parent=5 // pred_check_branch
        %288 = sbr.rel (%p285) target = $region28
      $region27: #{tpu_custom_call.1} parent=5 // pred_region
        %s289 = ssub.s32 %s27, 1
        %s290 = sand.u32 %s63, 1
        %s291 = scalar_lea.sflag [#allocation3], %s290
        %s292 = sand.u32 %s63, 1
        %s293 = smul.addr %s292, 128
        %s294 = scalar_lea.vmem [#allocation2], %s293
        // Predicated region
        $region29: #{tpu_custom_call.1} parent=27 // pred_check
          %p295 = pneg %p76
        $region30: #{tpu_custom_call.1} parent=27 // pred_check_branch
          %297 = sbr.rel (%p295) target = $region32
        $region31: #{tpu_custom_call.1} parent=27 // pred_region
          %299 = dma.done %s291, 2048
        $region32: #{tpu_custom_call.1} parent=27 // pred_fallthru
          _
        %s300 = sand.u32 %s93, 1
        %s301 = scalar_lea.sflag [#allocation6], %s300
        %s302 = sand.u32 %s93, 1
        %s303 = smul.addr %s302, 8
        %s304 = scalar_lea.vmem [#allocation5], %s303
        // Predicated region
        $region33: #{tpu_custom_call.1} parent=27 // pred_check
          %p305 = pneg %p106
        $region34: #{tpu_custom_call.1} parent=27 // pred_check_branch
          %307 = sbr.rel (%p305) target = $region36
        $region35: #{tpu_custom_call.1} parent=27 // pred_region
          %309 = dma.done %s301, 128
        $region36: #{tpu_custom_call.1} parent=27 // pred_fallthru
          _
        %s310 = sand.u32 %s63, 1
        %s311 = scalar_lea.sflag [#allocation3], %s310
        %s312 = sand.u32 %s63, 1
        %s313 = smul.addr %s312, 128
        %s314 = scalar_lea.vmem [#allocation2], %s313
        %p315 = pneg %p76
        %p316 = pneg %p73
        %s317 = sand.u32 %s93, 1
        %s318 = scalar_lea.sflag [#allocation6], %s317
        %s319 = sand.u32 %s93, 1
        %s320 = smul.addr %s319, 8
        %s321 = scalar_lea.vmem [#allocation5], %s320
        %p322 = pneg %p106
        %p323 = pneg %p103
        %p324 = pneg %p134
        %p325 = pneg %p131
        %s326 = sand.u32 %s121, 1
        %s327 = scalar_lea.sflag [#allocation4], %s326
        %s328 = sand.u32 %s121, 1
        %s329 = smul.addr %s328, 32
        %s330 = scalar_lea.vmem [#allocation7], %s329
        %p331 = pneg %p162
        %p332 = pneg %p159
        %s333 = sand.u32 %s32, 1
        %s334 = scalar_lea.sflag [#allocation9], %s333
        %s335 = sand.u32 %s149, 1
        %s336 = smul.addr %s335, 32
        %s337 = scalar_lea.vmem [#allocation8], %s336
        %p338 = pneg %p190
        %p339 = pneg %p187
        %s340 = sand.u32 %s32, 1
        %s341 = scalar_lea.sflag [#allocation9], %s340
        %s342 = sand.u32 %s177, 1
        %s343 = smul.addr %s342, 32
        %s344 = scalar_lea.vmem [#allocation10], %s343
        %p345 = pneg %p218
        %p346 = pneg %p215
        %s347 = sand.u32 %s205, 1
        %s348 = scalar_lea.sflag [#allocation12], %s347
        %s349 = sand.u32 %s205, 1
        %s350 = smul.addr %s349, 8
        %s351 = scalar_lea.vmem [#allocation11], %s350
        %s352 = sadd.s32 %s38, %s39
        %s353 = smul.u32 4, %s352
        %s354 = sadd.s32 %s38, %s39
        %p355 = scmp.eq.s32.totalorder %s39, 0
        // Predicated region
        $region37: #{tpu_custom_call.1} parent=27 // pred_check
          %p356 = pneg %p355
        $region38: #{tpu_custom_call.1} parent=27 // pred_check_branch
          %358 = sbr.rel (%p356) target = $region40
        $region39: #{tpu_custom_call.1} parent=27 // pred_region
          %359 = vst [vmem:[%s330] sm:$0xff] 0.0
          %360 = vst [vmem:[%s330 + $0x8] sm:$0xff] 0.0
          %361 = vst [vmem:[%s330 + $0x10] sm:$0xff] 0.0
          %362 = vst [vmem:[%s330 + $0x18] sm:$0xff] 0.0
          %363 = vst [vmem:[%s337] sm:$0xff] 0.0
          %364 = vst [vmem:[%s337 + $0x8] sm:$0xff] 0.0
          %365 = vst [vmem:[%s337 + $0x10] sm:$0xff] 0.0
          %366 = vst [vmem:[%s337 + $0x18] sm:$0xff] 0.0
          %367 = vst [vmem:[%s344] sm:$0xff] 0.0
          %368 = vst [vmem:[%s344 + $0x8] sm:$0xff] 0.0
          %369 = vst [vmem:[%s344 + $0x10] sm:$0xff] 0.0
          %370 = vst [vmem:[%s344 + $0x18] sm:$0xff] 0.0
          %371 = vst [vmem:[%s351] sm:$0xff] 0.0
        $region40: #{tpu_custom_call.1} parent=27 // pred_fallthru
          _
        %v372 = vld [vmem:[%s304] sm:$0xff]
        %v373 = vunpack.c.0.s8 %v372
        %v374 = vunpack.c.1.s8 %v372
        %v375 = vunpack.c.2.s8 %v372
        %v376 = vunpack.c.3.s8 %v372
        %v377 = vcvt.s32.f32 %v373
        %v378 = vcvt.s32.f32 %v374
        %v379 = vcvt.s32.f32 %v375
        %v380 = vcvt.s32.f32 %v376
        %v381 = vld [vmem:[%s294] sm:$0xff]
        %s382 = sadd.s32 0, 32
        %s383 = scalar_lea.vmem %s294, %s382 [#allocation2]
        %v384 = vld [vmem:[%s383] sm:$0xff]
        %s385 = sadd.s32 0, 64
        %s386 = scalar_lea.vmem %s294, %s385 [#allocation2]
        %v387 = vld [vmem:[%s386] sm:$0xff]
        %s388 = sadd.s32 0, 96
        %s389 = scalar_lea.vmem %s294, %s388 [#allocation2]
        %v390 = vld [vmem:[%s389] sm:$0xff]
        %v391 = vmax.f32 %v381, %v384
        %v392 = vmax.f32 %v391, %v387
        %v393 = vmax.f32 %v392, %v390
        %v394 = vsub.f32 %v381, %v393
        %v395 = vmul.f32 %v394, 1.442695
        %v396 = vpow.pop %v395
        %v397 = vsub.f32 %v384, %v393
        %v398 = vmul.f32 %v397, 1.442695
        %v399 = vpow.pop %v398
        %v400 = vsub.f32 %v387, %v393
        %v401 = vmul.f32 %v400, 1.442695
        %v402 = vpow.pop %v401
        %v403 = vsub.f32 %v390, %v393
        %v404 = vmul.f32 %v403, 1.442695
        %v405 = vpow.pop %v404
        %v406 = vadd.f32 %v396, %v399
        %v407 = vadd.f32 %v406, %v402
        %v408 = vadd.f32 %v407, %v405
        %v409 = vrcp.pop %v408
        %vm410 = vcmp.ge.f32.partialorder %v377, 0.0
        %v411 = vsel %vm410, 1, 0
        %v412 = vcvt.s32.f32 %v411
        %v413 = vmul.f32 %v409, %v412
        %v414 = vmul.f32 %v396, %v413
        %vm415 = vcmp.eq.f32.partialorder %v377, 0.0
        %v416 = vsel %vm415, 1, 0
        %v417 = vcvt.s32.f32 %v416
        %v418 = vmul.f32 %v414, %v417
        %v419 = vadd.f32 %v418, 0.0
        %v420 = vadd.f32 %v414, 0.0
        %v421 = vadd.f32 %v417, 0.0
        %v422 = vmul.f32 %v399, %v413
        %vm423 = vcmp.eq.f32.partialorder %v377, 1.0
        %v424 = vsel %vm423, 1, 0
        %v425 = vcvt.s32.f32 %v424
        %v426 = vmul.f32 %v422, %v425
        %v427 = vadd.f32 %v426, 0.0
        %v428 = vadd.f32 %v422, 0.0
        %v429 = vadd.f32 %v425, 0.0
        %v430 = vadd.f32 %v418, %v426
        %v431 = vmul.f32 %v402, %v413
        %vm432 = vcmp.eq.f32.partialorder %v377, 2.0
        %v433 = vsel %vm432, 1, 0
        %v434 = vcvt.s32.f32 %v433
        %v435 = vmul.f32 %v431, %v434
        %v436 = vadd.f32 %v435, 0.0
        %v437 = vadd.f32 %v431, 0.0
        %v438 = vadd.f32 %v434, 0.0
        %v439 = vadd.f32 %v430, %v435
        %v440 = vmul.f32 %v405, %v413
        %vm441 = vcmp.eq.f32.partialorder %v377, 3.0
        %v442 = vsel %vm441, 1, 0
        %v443 = vcvt.s32.f32 %v442
        %v444 = vmul.f32 %v440, %v443
        %v445 = vadd.f32 %v444, 0.0
        %v446 = vadd.f32 %v440, 0.0
        %v447 = vadd.f32 %v443, 0.0
        %v448 = vadd.f32 %v439, %v444
        %v449 = vmul.f32 %v448, 0.99998665
        %v450 = vadd.f32 %v449, 1.3333333e-05
        %v451 = vsub.f32 1.0, %v450
        %v452 = vmul.f32 %v451, %v451
        %v453 = vsub.f32 0.0, %v452
        %v454 = vlog2.pop %v450
        %v455 = vmul.f32 %v454, 0.6931472
        %v456 = vmul.f32 %v453, %v455
        %v457 = vmul.f32 %v456, %v412
        %v458 = vadd.f32 %v457, 0.0
        %s459 = sadd.s32 0, 8
        %s460 = scalar_lea.vmem %s294, %s459 [#allocation2]
        %v461 = vld [vmem:[%s460] sm:$0xff]
        %s462 = sadd.s32 %s459, 32
        %s463 = scalar_lea.vmem %s294, %s462 [#allocation2]
        %v464 = vld [vmem:[%s463] sm:$0xff]
        %s465 = sadd.s32 %s459, 64
        %s466 = scalar_lea.vmem %s294, %s465 [#allocation2]
        %v467 = vld [vmem:[%s466] sm:$0xff]
        %s468 = sadd.s32 %s459, 96
        %s469 = scalar_lea.vmem %s294, %s468 [#allocation2]
        %v470 = vld [vmem:[%s469] sm:$0xff]
        %v471 = vmax.f32 %v461, %v464
        %v472 = vmax.f32 %v471, %v467
        %v473 = vmax.f32 %v472, %v470
        %v474 = vsub.f32 %v461, %v473
        %v475 = vmul.f32 %v474, 1.442695
        %v476 = vpow.pop %v475
        %v477 = vsub.f32 %v464, %v473
        %v478 = vmul.f32 %v477, 1.442695
        %v479 = vpow.pop %v478
        %v480 = vsub.f32 %v467, %v473
        %v481 = vmul.f32 %v480, 1.442695
        %v482 = vpow.pop %v481
        %v483 = vsub.f32 %v470, %v473
        %v484 = vmul.f32 %v483, 1.442695
        %v485 = vpow.pop %v484
        %v486 = vadd.f32 %v476, %v479
        %v487 = vadd.f32 %v486, %v482
        %v488 = vadd.f32 %v487, %v485
        %v489 = vrcp.pop %v488
        %vm490 = vcmp.ge.f32.partialorder %v378, 0.0
        %v491 = vsel %vm490, 1, 0
        %v492 = vcvt.s32.f32 %v491
        %v493 = vmul.f32 %v489, %v492
        %v494 = vmul.f32 %v476, %v493
        %vm495 = vcmp.eq.f32.partialorder %v378, 0.0
        %v496 = vsel %vm495, 1, 0
        %v497 = vcvt.s32.f32 %v496
        %v498 = vmul.f32 %v494, %v497
        %v499 = vadd.f32 %v419, %v498
        %v500 = vadd.f32 %v420, %v494
        %v501 = vadd.f32 %v421, %v497
        %v502 = vmul.f32 %v479, %v493
        %vm503 = vcmp.eq.f32.partialorder %v378, 1.0
        %v504 = vsel %vm503, 1, 0
        %v505 = vcvt.s32.f32 %v504
        %v506 = vmul.f32 %v502, %v505
        %v507 = vadd.f32 %v427, %v506
        %v508 = vadd.f32 %v428, %v502
        %v509 = vadd.f32 %v429, %v505
        %v510 = vadd.f32 %v498, %v506
        %v511 = vmul.f32 %v482, %v493
        %vm512 = vcmp.eq.f32.partialorder %v378, 2.0
        %v513 = vsel %vm512, 1, 0
        %v514 = vcvt.s32.f32 %v513
        %v515 = vmul.f32 %v511, %v514
        %v516 = vadd.f32 %v436, %v515
        %v517 = vadd.f32 %v437, %v511
        %v518 = vadd.f32 %v438, %v514
        %v519 = vadd.f32 %v510, %v515
        %v520 = vmul.f32 %v485, %v493
        %vm521 = vcmp.eq.f32.partialorder %v378, 3.0
        %v522 = vsel %vm521, 1, 0
        %v523 = vcvt.s32.f32 %v522
        %v524 = vmul.f32 %v520, %v523
        %v525 = vadd.f32 %v445, %v524
        %v526 = vadd.f32 %v446, %v520
        %v527 = vadd.f32 %v447, %v523
        %v528 = vadd.f32 %v519, %v524
        %v529 = vmul.f32 %v528, 0.99998665
        %v530 = vadd.f32 %v529, 1.3333333e-05
        %v531 = vsub.f32 1.0, %v530
        %v532 = vmul.f32 %v531, %v531
        %v533 = vsub.f32 0.0, %v532
        %v534 = vlog2.pop %v530
        %v535 = vmul.f32 %v534, 0.6931472
        %v536 = vmul.f32 %v533, %v535
        %v537 = vmul.f32 %v536, %v492
        %v538 = vadd.f32 %v458, %v537
        %s539 = sadd.s32 0, 16
        %s540 = scalar_lea.vmem %s294, %s539 [#allocation2]
        %v541 = vld [vmem:[%s540] sm:$0xff]
        %s542 = sadd.s32 %s539, 32
        %s543 = scalar_lea.vmem %s294, %s542 [#allocation2]
        %v544 = vld [vmem:[%s543] sm:$0xff]
        %s545 = sadd.s32 %s539, 64
        %s546 = scalar_lea.vmem %s294, %s545 [#allocation2]
        %v547 = vld [vmem:[%s546] sm:$0xff]
        %s548 = sadd.s32 %s539, 96
        %s549 = scalar_lea.vmem %s294, %s548 [#allocation2]
        %v550 = vld [vmem:[%s549] sm:$0xff]
        %v551 = vmax.f32 %v541, %v544
        %v552 = vmax.f32 %v551, %v547
        %v553 = vmax.f32 %v552, %v550
        %v554 = vsub.f32 %v541, %v553
        %v555 = vmul.f32 %v554, 1.442695
        %v556 = vpow.pop %v555
        %v557 = vsub.f32 %v544, %v553
        %v558 = vmul.f32 %v557, 1.442695
        %v559 = vpow.pop %v558
        %v560 = vsub.f32 %v547, %v553
        %v561 = vmul.f32 %v560, 1.442695
        %v562 = vpow.pop %v561
        %v563 = vsub.f32 %v550, %v553
        %v564 = vmul.f32 %v563, 1.442695
        %v565 = vpow.pop %v564
        %v566 = vadd.f32 %v556, %v559
        %v567 = vadd.f32 %v566, %v562
        %v568 = vadd.f32 %v567, %v565
        %v569 = vrcp.pop %v568
        %vm570 = vcmp.ge.f32.partialorder %v379, 0.0
        %v571 = vsel %vm570, 1, 0
        %v572 = vcvt.s32.f32 %v571
        %v573 = vmul.f32 %v569, %v572
        %v574 = vmul.f32 %v556, %v573
        %vm575 = vcmp.eq.f32.partialorder %v379, 0.0
        %v576 = vsel %vm575, 1, 0
        %v577 = vcvt.s32.f32 %v576
        %v578 = vmul.f32 %v574, %v577
        %v579 = vadd.f32 %v499, %v578
        %v580 = vadd.f32 %v500, %v574
        %v581 = vadd.f32 %v501, %v577
        %v582 = vmul.f32 %v559, %v573
        %vm583 = vcmp.eq.f32.partialorder %v379, 1.0
        %v584 = vsel %vm583, 1, 0
        %v585 = vcvt.s32.f32 %v584
        %v586 = vmul.f32 %v582, %v585
        %v587 = vadd.f32 %v507, %v586
        %v588 = vadd.f32 %v508, %v582
        %v589 = vadd.f32 %v509, %v585
        %v590 = vadd.f32 %v578, %v586
        %v591 = vmul.f32 %v562, %v573
        %vm592 = vcmp.eq.f32.partialorder %v379, 2.0
        %v593 = vsel %vm592, 1, 0
        %v594 = vcvt.s32.f32 %v593
        %v595 = vmul.f32 %v591, %v594
        %v596 = vadd.f32 %v516, %v595
        %v597 = vadd.f32 %v517, %v591
        %v598 = vadd.f32 %v518, %v594
        %v599 = vadd.f32 %v590, %v595
        %v600 = vmul.f32 %v565, %v573
        %vm601 = vcmp.eq.f32.partialorder %v379, 3.0
        %v602 = vsel %vm601, 1, 0
        %v603 = vcvt.s32.f32 %v602
        %v604 = vmul.f32 %v600, %v603
        %v605 = vadd.f32 %v525, %v604
        %v606 = vadd.f32 %v526, %v600
        %v607 = vadd.f32 %v527, %v603
        %v608 = vadd.f32 %v599, %v604
        %v609 = vmul.f32 %v608, 0.99998665
        %v610 = vadd.f32 %v609, 1.3333333e-05
        %v611 = vsub.f32 1.0, %v610
        %v612 = vmul.f32 %v611, %v611
        %v613 = vsub.f32 0.0, %v612
        %v614 = vlog2.pop %v610
        %v615 = vmul.f32 %v614, 0.6931472
        %v616 = vmul.f32 %v613, %v615
        %v617 = vmul.f32 %v616, %v572
        %v618 = vadd.f32 %v538, %v617
        %s619 = sadd.s32 0, 24
        %s620 = scalar_lea.vmem %s294, %s619 [#allocation2]
        %v621 = vld [vmem:[%s620] sm:$0xff]
        %s622 = sadd.s32 %s619, 32
        %s623 = scalar_lea.vmem %s294, %s622 [#allocation2]
        %v624 = vld [vmem:[%s623] sm:$0xff]
        %s625 = sadd.s32 %s619, 64
        %s626 = scalar_lea.vmem %s294, %s625 [#allocation2]
        %v627 = vld [vmem:[%s626] sm:$0xff]
        %s628 = sadd.s32 %s619, 96
        %s629 = scalar_lea.vmem %s294, %s628 [#allocation2]
        %v630 = vld [vmem:[%s629] sm:$0xff]
        %v631 = vmax.f32 %v621, %v624
        %v632 = vmax.f32 %v631, %v627
        %v633 = vmax.f32 %v632, %v630
        %v634 = vsub.f32 %v621, %v633
        %v635 = vmul.f32 %v634, 1.442695
        %v636 = vpow.pop %v635
        %v637 = vsub.f32 %v624, %v633
        %v638 = vmul.f32 %v637, 1.442695
        %v639 = vpow.pop %v638
        %v640 = vsub.f32 %v627, %v633
        %v641 = vmul.f32 %v640, 1.442695
        %v642 = vpow.pop %v641
        %v643 = vsub.f32 %v630, %v633
        %v644 = vmul.f32 %v643, 1.442695
        %v645 = vpow.pop %v644
        %v646 = vadd.f32 %v636, %v639
        %v647 = vadd.f32 %v646, %v642
        %v648 = vadd.f32 %v647, %v645
        %v649 = vrcp.pop %v648
        %vm650 = vcmp.ge.f32.partialorder %v380, 0.0
        %v651 = vsel %vm650, 1, 0
        %v652 = vcvt.s32.f32 %v651
        %v653 = vmul.f32 %v649, %v652
        %v654 = vmul.f32 %v636, %v653
        %vm655 = vcmp.eq.f32.partialorder %v380, 0.0
        %v656 = vsel %vm655, 1, 0
        %v657 = vcvt.s32.f32 %v656
        %v658 = vmul.f32 %v654, %v657
        %v659 = vadd.f32 %v579, %v658
        %v660 = vadd.f32 %v580, %v654
        %v661 = vadd.f32 %v581, %v657
        %v662 = vmul.f32 %v639, %v653
        %vm663 = vcmp.eq.f32.partialorder %v380, 1.0
        %v664 = vsel %vm663, 1, 0
        %v665 = vcvt.s32.f32 %v664
        %v666 = vmul.f32 %v662, %v665
        %v667 = vadd.f32 %v587, %v666
        %v668 = vadd.f32 %v588, %v662
        %v669 = vadd.f32 %v589, %v665
        %v670 = vadd.f32 %v658, %v666
        %v671 = vmul.f32 %v642, %v653
        %vm672 = vcmp.eq.f32.partialorder %v380, 2.0
        %v673 = vsel %vm672, 1, 0
        %v674 = vcvt.s32.f32 %v673
        %v675 = vmul.f32 %v671, %v674
        %v676 = vadd.f32 %v596, %v675
        %v677 = vadd.f32 %v597, %v671
        %v678 = vadd.f32 %v598, %v674
        %v679 = vadd.f32 %v670, %v675
        %v680 = vmul.f32 %v645, %v653
        %vm681 = vcmp.eq.f32.partialorder %v380, 3.0
        %v682 = vsel %vm681, 1, 0
        %v683 = vcvt.s32.f32 %v682
        %v684 = vmul.f32 %v680, %v683
        %v685 = vadd.f32 %v605, %v684
        %v686 = vadd.f32 %v606, %v680
        %v687 = vadd.f32 %v607, %v683
        %v688 = vadd.f32 %v679, %v684
        %v689 = vmul.f32 %v688, 0.99998665
        %v690 = vadd.f32 %v689, 1.3333333e-05
        %v691 = vsub.f32 1.0, %v690
        %v692 = vmul.f32 %v691, %v691
        %v693 = vsub.f32 0.0, %v692
        %v694 = vlog2.pop %v690
        %v695 = vmul.f32 %v694, 0.6931472
        %v696 = vmul.f32 %v693, %v695
        %v697 = vmul.f32 %v696, %v652
        %v698 = vadd.f32 %v618, %v697
        %v699 = vld [vmem:[%s330] sm:$0xff]
        %v700 = vadd.f32 %v699, %v659
        %701 = vst [vmem:[%s330] sm:$0xff] %v700
        %v702 = vld [vmem:[%s337] sm:$0xff]
        %v703 = vadd.f32 %v702, %v660
        %704 = vst [vmem:[%s337] sm:$0xff] %v703
        %v705 = vld [vmem:[%s344] sm:$0xff]
        %v706 = vadd.f32 %v705, %v661
        %707 = vst [vmem:[%s344] sm:$0xff] %v706
        %v708 = vld [vmem:[%s330 + $0x8] sm:$0xff]
        %v709 = vadd.f32 %v708, %v667
        %710 = vst [vmem:[%s330 + $0x8] sm:$0xff] %v709
        %v711 = vld [vmem:[%s337 + $0x8] sm:$0xff]
        %v712 = vadd.f32 %v711, %v668
        %713 = vst [vmem:[%s337 + $0x8] sm:$0xff] %v712
        %v714 = vld [vmem:[%s344 + $0x8] sm:$0xff]
        %v715 = vadd.f32 %v714, %v669
        %716 = vst [vmem:[%s344 + $0x8] sm:$0xff] %v715
        %v717 = vld [vmem:[%s330 + $0x10] sm:$0xff]
        %v718 = vadd.f32 %v717, %v676
        %719 = vst [vmem:[%s330 + $0x10] sm:$0xff] %v718
        %v720 = vld [vmem:[%s337 + $0x10] sm:$0xff]
        %v721 = vadd.f32 %v720, %v677
        %722 = vst [vmem:[%s337 + $0x10] sm:$0xff] %v721
        %v723 = vld [vmem:[%s344 + $0x10] sm:$0xff]
        %v724 = vadd.f32 %v723, %v678
        %725 = vst [vmem:[%s344 + $0x10] sm:$0xff] %v724
        %v726 = vld [vmem:[%s330 + $0x18] sm:$0xff]
        %v727 = vadd.f32 %v726, %v685
        %728 = vst [vmem:[%s330 + $0x18] sm:$0xff] %v727
        %v729 = vld [vmem:[%s337 + $0x18] sm:$0xff]
        %v730 = vadd.f32 %v729, %v686
        %731 = vst [vmem:[%s337 + $0x18] sm:$0xff] %v730
        %v732 = vld [vmem:[%s344 + $0x18] sm:$0xff]
        %v733 = vadd.f32 %v732, %v687
        %734 = vst [vmem:[%s344 + $0x18] sm:$0xff] %v733
        %v735 = vld [vmem:[%s351] sm:$0xff]
        %v736 = vadd.f32 %v735, %v698
        %737 = vst [vmem:[%s351] sm:$0xff] %v736
        %s738 = sand.u32 %s121, 1
        %s739 = scalar_lea.sflag [#allocation4], %s738
        %s740 = sand.u32 %s121, 1
        %s741 = smul.addr %s740, 32
        %s742 = scalar_lea.vmem [#allocation7], %s741
        %s743 = sand.u32 %s32, 1
        %s744 = scalar_lea.sflag [#allocation9], %s743
        %s745 = sand.u32 %s149, 1
        %s746 = smul.addr %s745, 32
        %s747 = scalar_lea.vmem [#allocation8], %s746
        %s748 = sand.u32 %s32, 1
        %s749 = scalar_lea.sflag [#allocation9], %s748
        %s750 = sand.u32 %s177, 1
        %s751 = smul.addr %s750, 32
        %s752 = scalar_lea.vmem [#allocation10], %s751
        %s753 = sand.u32 %s205, 1
        %s754 = scalar_lea.sflag [#allocation12], %s753
        %s755 = sand.u32 %s205, 1
        %s756 = smul.addr %s755, 8
        %s757 = scalar_lea.vmem [#allocation11], %s756
        // Predicated region
        $region41: #{tpu_custom_call.1} parent=27 // pred_check
          %p758 = pneg %p131
        $region42: #{tpu_custom_call.1} parent=27 // pred_check_branch
          %760 = sbr.rel (%p758) target = $region44
        $region43: #{tpu_custom_call.1} parent=27 // pred_region
          %762 = vsyncadd %s739, 0
          %s763 = smul.addr %s38, 4
          %s764 = smul.addr %s37, 4
          %s765 = sadd.s32 %s763, %s764
          %s766 = smul.addr %s765, 8
          %s767 = scalar_lea.hbm %s2, %s766
          %s768 = sshll.u32 %s742, 4
          %s769 = int_to_ptr.vmem [resolvable:$true] %s768
          %s770 = sshll.u32 %s767, 4
          %s771 = int_to_ptr.hbm [resolvable:$true] %s770
          %776 = dma.vmem_to_hbm [thread:$0]  %s769, 512, %s771, %s739, 128, 128, 8
        $region44: #{tpu_custom_call.1} parent=27 // pred_fallthru
          _
        // Predicated region
        $region45: #{tpu_custom_call.1} parent=27 // pred_check
          %p777 = pneg %p159
        $region46: #{tpu_custom_call.1} parent=27 // pred_check_branch
          %779 = sbr.rel (%p777) target = $region48
        $region47: #{tpu_custom_call.1} parent=27 // pred_region
          %781 = vsyncadd %s744, 0
          %s782 = smul.addr %s38, 4
          %s783 = smul.addr %s37, 4
          %s784 = sadd.s32 %s782, %s783
          %s785 = smul.addr %s784, 8
          %s786 = scalar_lea.hbm %s3, %s785
          %s787 = sshll.u32 %s747, 4
          %s788 = int_to_ptr.vmem [resolvable:$true] %s787
          %s789 = sshll.u32 %s786, 4
          %s790 = int_to_ptr.hbm [resolvable:$true] %s789
          %795 = dma.vmem_to_hbm [thread:$0]  %s788, 512, %s790, %s744, 128, 128, 8
        $region48: #{tpu_custom_call.1} parent=27 // pred_fallthru
          _
        // Predicated region
        $region49: #{tpu_custom_call.1} parent=27 // pred_check
          %p796 = pneg %p187
        $region50: #{tpu_custom_call.1} parent=27 // pred_check_branch
          %798 = sbr.rel (%p796) target = $region52
        $region51: #{tpu_custom_call.1} parent=27 // pred_region
          %800 = vsyncadd %s749, 0
          %s801 = smul.addr %s38, 4
          %s802 = smul.addr %s37, 4
          %s803 = sadd.s32 %s801, %s802
          %s804 = smul.addr %s803, 8
          %s805 = scalar_lea.hbm %s4, %s804
          %s806 = sshll.u32 %s752, 4
          %s807 = int_to_ptr.vmem [resolvable:$true] %s806
          %s808 = sshll.u32 %s805, 4
          %s809 = int_to_ptr.hbm [resolvable:$true] %s808
          %814 = dma.vmem_to_hbm [thread:$0]  %s807, 512, %s809, %s749, 128, 128, 8
        $region52: #{tpu_custom_call.1} parent=27 // pred_fallthru
          _
        // Predicated region
        $region53: #{tpu_custom_call.1} parent=27 // pred_check
          %p815 = pneg %p215
        $region54: #{tpu_custom_call.1} parent=27 // pred_check_branch
          %817 = sbr.rel (%p815) target = $region56
        $region55: #{tpu_custom_call.1} parent=27 // pred_region
          %819 = vsyncadd %s754, 0
          %s820 = sadd.s32 %s38, %s37
          %s821 = smul.addr %s820, 8
          %s822 = scalar_lea.hbm %s5, %s821
          %s824 = sshll.u32 %s757, 4
          %s825 = int_to_ptr.vmem [resolvable:$true] %s824
          %s826 = sshll.u32 %s822, 4
          %s827 = int_to_ptr.hbm [resolvable:$true] %s826
          %829 = dma.vmem_to_hbm [thread:$0]  %s825, 128, %s827, %s754
        $region56: #{tpu_custom_call.1} parent=27 // pred_fallthru
          _
      $region28: #{tpu_custom_call.1} parent=5 // pred_fallthru
        _
      %p830 = scmp.le.s32.totalorder 2, %s27
      // Predicated region
      $region57: #{tpu_custom_call.1} parent=5 // pred_check
        %p831 = pneg %p830
      $region58: #{tpu_custom_call.1} parent=5 // pred_check_branch
        %833 = sbr.rel (%p831) target = $region60
      $region59: #{tpu_custom_call.1} parent=5 // pred_region
        %s834 = ssub.s32 %s27, 2
        // Predicated region
        $region61: #{tpu_custom_call.1} parent=59 // pred_check
          %p835 = pneg %p137
        $region62: #{tpu_custom_call.1} parent=59 // pred_check_branch
          %837 = sbr.rel (%p835) target = $region64
        $region63: #{tpu_custom_call.1} parent=59 // pred_region
          %s838 = sand.u32 %s122, 1
          %s839 = scalar_lea.sflag [#allocation4], %s838
          %s840 = sand.u32 %s122, 1
          %s841 = smul.addr %s840, 32
          %s842 = scalar_lea.vmem [#allocation7], %s841
          %844 = dma.done %s839, 512
        $region64: #{tpu_custom_call.1} parent=59 // pred_fallthru
          _
        // Predicated region
        $region65: #{tpu_custom_call.1} parent=59 // pred_check
          %p845 = pneg %p165
        $region66: #{tpu_custom_call.1} parent=59 // pred_check_branch
          %847 = sbr.rel (%p845) target = $region68
        $region67: #{tpu_custom_call.1} parent=59 // pred_region
          %s848 = sand.u32 %s33, 1
          %s849 = scalar_lea.sflag [#allocation9], %s848
          %s850 = sand.u32 %s150, 1
          %s851 = smul.addr %s850, 32
          %s852 = scalar_lea.vmem [#allocation8], %s851
          %854 = dma.done %s849, 512
        $region68: #{tpu_custom_call.1} parent=59 // pred_fallthru
          _
        // Predicated region
        $region69: #{tpu_custom_call.1} parent=59 // pred_check
          %p855 = pneg %p193
        $region70: #{tpu_custom_call.1} parent=59 // pred_check_branch
          %857 = sbr.rel (%p855) target = $region72
        $region71: #{tpu_custom_call.1} parent=59 // pred_region
          %s858 = sand.u32 %s33, 1
          %s859 = scalar_lea.sflag [#allocation9], %s858
          %s860 = sand.u32 %s178, 1
          %s861 = smul.addr %s860, 32
          %s862 = scalar_lea.vmem [#allocation10], %s861
          %864 = dma.done %s859, 512
        $region72: #{tpu_custom_call.1} parent=59 // pred_fallthru
          _
        // Predicated region
        $region73: #{tpu_custom_call.1} parent=59 // pred_check
          %p865 = pneg %p221
        $region74: #{tpu_custom_call.1} parent=59 // pred_check_branch
          %867 = sbr.rel (%p865) target = $region76
        $region75: #{tpu_custom_call.1} parent=59 // pred_region
          %s868 = sand.u32 %s206, 1
          %s869 = scalar_lea.sflag [#allocation12], %s868
          %s870 = sand.u32 %s206, 1
          %s871 = smul.addr %s870, 8
          %s872 = scalar_lea.vmem [#allocation11], %s871
          %874 = dma.done %s869, 128
        $region76: #{tpu_custom_call.1} parent=59 // pred_fallthru
          _
      $region60: #{tpu_custom_call.1} parent=5 // pred_fallthru
        _
    $region6: #{tpu_custom_call.1} parent=1 // loop_footer
      %s31 = sadd.s32 1, %s27
    $region7: #{tpu_custom_call.1} parent=1 // loop_footer_branch
      %26 = sbr.rel target = $region3
    $region8: #{tpu_custom_call.1} parent=1 // loop_exit
      _
    %875 = vsyncpa [#allocation3], 1
    %s876 = scalar_lea.sflag [#allocation3], 1
    %877 = vsyncpa %s876, 1
    %878 = vsyncpa [#allocation6], 1
    %s879 = scalar_lea.sflag [#allocation6], 1
    %880 = vsyncpa %s879, 1
    %881 = vsyncpa [#allocation4], 1
    %s882 = scalar_lea.sflag [#allocation4], 1
    %883 = vsyncpa %s882, 1
    %884 = vsyncpa [#allocation9], 1
    %s885 = scalar_lea.sflag [#allocation9], 1
    %886 = vsyncpa %s885, 1
    %887 = vsyncpa [#allocation12], 1
    %s888 = scalar_lea.sflag [#allocation12], 1
    %889 = vsyncpa %s888, 1

</llo_original>
